<compile_context>
chip_gen: v7x
topology: tpu7x:2x2x1
jax: 0.10.0
libtpu: 0.0.40
codegen_flags: <defaults>
</compile_context>

<pallas_src>
import jax
import jax.numpy as jnp
import numpy as np
from jax.experimental import pallas as pl
from jax.experimental.pallas import tpu as pltpu

LANE = 128


def _sigmoid(a):
    # exp on the EUP, exact reciprocal instead of a VPU divide.
    return pl.reciprocal(1.0 + jnp.exp(-a), approx=False)


def _gru_cell(x, h, wi_ref, wh_ref, b_ref):
    """PyTorch-semantics GRU cell with per-gate weights (gate order r, z, n).

    wi_ref: [3, in, H]   input->gate weights
    wh_ref: [3, H,  H]   hidden->gate weights
    b_ref : [4, 1,  H]   (b_r = b_ir + b_hr, b_z = b_iz + b_hz, b_in, b_hn)
    """
    f32 = jnp.float32
    r = _sigmoid(jnp.dot(x, wi_ref[0], preferred_element_type=f32)
                 + jnp.dot(h, wh_ref[0], preferred_element_type=f32)
                 + b_ref[0])
    z = _sigmoid(jnp.dot(x, wi_ref[1], preferred_element_type=f32)
                 + jnp.dot(h, wh_ref[1], preferred_element_type=f32)
                 + b_ref[1])
    n = jnp.tanh(jnp.dot(x, wi_ref[2], preferred_element_type=f32)
                 + b_ref[2]
                 + r * (jnp.dot(h, wh_ref[2], preferred_element_type=f32) + b_ref[3]))
    return (1.0 - z) * n + z * h


def decoder_kernel(x_ref, hin_ref,
                   wi0_ref, wh0_ref, b0_ref,
                   wi1_ref, wh1_ref, b1_ref,
                   wp_ref, bp_ref,
                   probs_ref, h_ref):
    t = pl.program_id(0)

    # Seed the resident hidden-state output block from the input hidden at step 0.
    @pl.when(t == 0)
    def _():
        h_ref[...] = hin_ref[...]

    x = x_ref[0]          # [B, E] embedded token for this step
    h0 = h_ref[0]
    h1 = h_ref[1]

    # GRU layer 0 (input = embedded token), layer 1 (input = layer-0 output).
    h0n = _gru_cell(x, h0, wi0_ref, wh0_ref, b0_ref)
    h1n = _gru_cell(h0n, h1, wi1_ref, wh1_ref, b1_ref)

    # Projection + softmax over the lane-padded vocab. Padded columns carry a
    # -1e30 bias so exp(..) == 0 and they never affect max / sum.
    logits = jnp.dot(h1n, wp_ref[...], preferred_element_type=jnp.float32) + bp_ref[...]
    m = jnp.max(logits, axis=-1, keepdims=True)
    e = jnp.exp(logits - m)
    denom = jnp.sum(e, axis=-1, keepdims=True)
    probs_ref[0] = e * pl.reciprocal(denom, approx=False)

    # Carry hidden state to the next grid step (and out through the aliased output).
    h_ref[0] = h0n
    h_ref[1] = h1n


def decoder_forward(packed, tokens, hidden):
    """tokens: [T, B] int32 ids (T == 1 reproduces the original single-step forward);
    hidden: [2, B, H] f32.  Returns (probs [T, B, vocab], new_hidden [2, B, H])."""
    T, B = tokens.shape
    H = hidden.shape[-1]
    E = packed["embedding"].shape[-1]
    Vp = packed["w_proj"].shape[-1]
    V = packed["vocab_size"]

    # Embedding gather is glue: one gather for all T steps, streamed per-step below.
    # TODO(synk): for HBM-resident tables, gather in-kernel via scalar-prefetched ids
    # + manual row DMAs instead of this host-side gather.
    x_emb = packed["embedding"][tokens]                       # [T, B, E]

    weight_bytes = sum(int(packed[k].size) * 4 for k in
                       ("wi0", "wh0", "b0", "wi1", "wh1", "b1", "w_proj", "b_proj"))
    cost = pl.CostEstimate(
        flops=int(T * 2 * B * H * (3 * E + 9 * H + Vp)),
        transcendentals=int(T * B * (6 * H + Vp)),
        bytes_accessed=int((x_emb.size + 2 * hidden.size + T * B * Vp) * 4 + weight_bytes),
    )

    probs_p, h_new = pl.pallas_call(
        decoder_kernel,
        out_shape=(jax.ShapeDtypeStruct((T, B, Vp), jnp.float32),
                   jax.ShapeDtypeStruct((2, B, H), jnp.float32)),
        grid=(T,),
        in_specs=[
            pl.BlockSpec((1, B, E), lambda t: (t, 0, 0)),            # x_emb: per-step block
            pl.BlockSpec((2, B, H), lambda t: (0, 0, 0)),            # hidden (loaded once)
            pl.BlockSpec(packed["wi0"].shape, lambda t: (0, 0, 0)),  # weights: resident
            pl.BlockSpec(packed["wh0"].shape, lambda t: (0, 0, 0)),
            pl.BlockSpec(packed["b0"].shape, lambda t: (0, 0, 0)),
            pl.BlockSpec(packed["wi1"].shape, lambda t: (0, 0, 0)),
            pl.BlockSpec(packed["wh1"].shape, lambda t: (0, 0, 0)),
            pl.BlockSpec(packed["b1"].shape, lambda t: (0, 0, 0)),
            pl.BlockSpec(packed["w_proj"].shape, lambda t: (0, 0)),
            pl.BlockSpec(packed["b_proj"].shape, lambda t: (0, 0)),
        ],
        out_specs=(pl.BlockSpec((1, B, Vp), lambda t: (t, 0, 0)),    # lane-dense probs
                   pl.BlockSpec((2, B, H), lambda t: (0, 0, 0))),    # resident hidden carry
        input_output_aliases={1: 1},                                 # hidden buffer reused
        compiler_params=pltpu.CompilerParams(
            dimension_semantics=("arbitrary",)),                     # steps carry state
        cost_estimate=cost,
    )(x_emb, hidden,
      packed["wi0"], packed["wh0"], packed["b0"],
      packed["wi1"], packed["wh1"], packed["b1"],
      packed["w_proj"], packed["b_proj"])

    return probs_p[:, :, :V], h_new


def decoder_reference(params, tokens, hidden):
    """Pure-JAX reference: T sequential applications of nn.GRU(num_layers=2)+Linear+softmax."""
    H = hidden.shape[-1]

    def cell(xi, h, w_ih, w_hh, b_ih, b_hh):
        gi = xi @ w_ih + b_ih
        gh = h @ w_hh + b_hh
        r = 1.0 / (1.0 + jnp.exp(-(gi[:, :H] + gh[:, :H])))
        z = 1.0 / (1.0 + jnp.exp(-(gi[:, H:2 * H] + gh[:, H:2 * H])))
        n = jnp.tanh(gi[:, 2 * H:] + r * gh[:, 2 * H:])
        return (1.0 - z) * n + z * h

    h0, h1 = hidden[0], hidden[1]
    probs = []
    for t in range(tokens.shape[0]):
        x = params["embedding"][tokens[t]]
        h0 = cell(x, h0, params["w_ih0"], params["w_hh0"], params["b_ih0"], params["b_hh0"])
        h1 = cell(h0, h1, params["w_ih1"], params["w_hh1"], params["b_ih1"], params["b_hh1"])
        logits = h1 @ params["w_proj"] + params["b_proj"]
        m = jnp.max(logits, axis=1, keepdims=True)
        e = jnp.exp(logits - m)
        probs.append(e / jnp.sum(e, axis=1, keepdims=True))
    return jnp.stack(probs, axis=0), jnp.stack([h0, h1], axis=0)


def init_params(key, vocab_size, embedding_dimension, hidden_size):
    """Canonical parameters (transposed vs. PyTorch, gate order r, z, n)."""
    ks = jax.random.split(key, 11)
    H, E, V = hidden_size, embedding_dimension, vocab_size
    s = 1.0 / np.sqrt(H)

    def u(k, shape):
        return jax.random.uniform(k, shape, jnp.float32, -s, s)

    return {
        "embedding": jax.random.normal(ks[0], (V, E), jnp.float32),
        "w_ih0": u(ks[1], (E, 3 * H)), "w_hh0": u(ks[2], (H, 3 * H)),
        "b_ih0": u(ks[3], (1, 3 * H)), "b_hh0": u(ks[4], (1, 3 * H)),
        "w_ih1": u(ks[5], (H, 3 * H)), "w_hh1": u(ks[6], (H, 3 * H)),
        "b_ih1": u(ks[7], (1, 3 * H)), "b_hh1": u(ks[8], (1, 3 * H)),
        "w_proj": u(ks[9], (H, V)), "b_proj": u(ks[10], (1, V)),
    }


def pack_params(p, hidden_size, vocab_size):
    """Offline re-layout for the kernel: per-gate weight stacks, folded r/z biases,
    and vocab padded to a 128-lane multiple (padded logits get a -1e30 bias)."""
    H, V = hidden_size, vocab_size
    Vp = ((V + LANE - 1) // LANE) * LANE

    def gate_stack(w):                       # [in, 3H] -> [3, in, H]
        return jnp.stack([w[:, 0:H], w[:, H:2 * H], w[:, 2 * H:3 * H]], axis=0)

    def bias_stack(b_ih, b_hh):              # -> [4, 1, H]
        return jnp.stack([b_ih[:, 0:H] + b_hh[:, 0:H],
                          b_ih[:, H:2 * H] + b_hh[:, H:2 * H],
                          b_ih[:, 2 * H:3 * H],
                          b_hh[:, 2 * H:3 * H]], axis=0)

    w_proj = jnp.zeros((H, Vp), jnp.float32).at[:, :V].set(p["w_proj"])
    b_proj = jnp.full((1, Vp), -1e30, jnp.float32).at[:, :V].set(p["b_proj"])

    # TODO(synk): on v6e/v7x cast the weight stacks to bf16 (keep f32 accumulation) and
    # tile w_proj over a vocab grid axis once vocab reaches production sizes; kept f32
    # and un-tiled here since V=64 fits trivially in VMEM and the reference is f32.
    return {
        "embedding": p["embedding"],
        "vocab_size": V,
        "wi0": gate_stack(p["w_ih0"]), "wh0": gate_stack(p["w_hh0"]),
        "b0": bias_stack(p["b_ih0"], p["b_hh0"]),
        "wi1": gate_stack(p["w_ih1"]), "wh1": gate_stack(p["w_hh1"]),
        "b1": bias_stack(p["b_ih1"], p["b_hh1"]),
        "w_proj": w_proj, "b_proj": b_proj,
    }


if __name__ == "__main__":
    batch = 8
    hidden_size = 32
    embedding_dimension = 16
    vocab_size = 64
    num_steps = 6

    key = jax.random.PRNGKey(0)
    kp, kx, kh = jax.random.split(key, 3)

    params = init_params(kp, vocab_size, embedding_dimension, hidden_size)
    packed = pack_params(params, hidden_size, vocab_size)

    hidden = jax.random.normal(kh, (2, batch, hidden_size), jnp.float32)
    tokens = jax.random.randint(kx, (num_steps, batch), 0, vocab_size, dtype=jnp.int32)

    # (a) Original module semantics: a single time step (T == 1).
    probs1, h1 = decoder_forward(packed, tokens[:1], hidden)
    jax.block_until_ready((probs1, h1))
    probs1_ref, h1_ref = decoder_reference(params, tokens[:1], hidden)
    np.testing.assert_allclose(np.asarray(probs1), np.asarray(probs1_ref), rtol=1e-4, atol=1e-5)
    np.testing.assert_allclose(np.asarray(h1), np.asarray(h1_ref), rtol=1e-4, atol=1e-5)

    # (b) T decode steps amortized inside one kernel launch (weights stay in VMEM).
    probsT, hT = decoder_forward(packed, tokens, hidden)
    jax.block_until_ready((probsT, hT))
    probsT_ref, hT_ref = decoder_reference(params, tokens, hidden)
    np.testing.assert_allclose(np.asarray(probsT), np.asarray(probsT_ref), rtol=1e-4, atol=1e-5)
    np.testing.assert_allclose(np.asarray(hT), np.asarray(hT_ref), rtol=1e-4, atol=1e-5)

    # Sanity: softmax rows sum to 1 (padding columns contribute nothing).
    np.testing.assert_allclose(np.asarray(probsT).sum(axis=-1),
                               np.ones((num_steps, batch)), rtol=1e-5, atol=1e-5)

    print("KERNEL_OK")
</pallas_src>

<mosaic_0001>
module attributes {stable_mosaic.version = 11 : i64} {
  func.func @decoder_kernel(%arg0: i32, %arg1: memref<1x8x16xf32, #tpu.memory_space<vmem>>, %arg2: memref<2x8x32xf32, #tpu.memory_space<vmem>>, %arg3: memref<3x16x32xf32, #tpu.memory_space<vmem>>, %arg4: memref<3x32x32xf32, #tpu.memory_space<vmem>>, %arg5: memref<4x1x32xf32, #tpu.memory_space<vmem>>, %arg6: memref<3x32x32xf32, #tpu.memory_space<vmem>>, %arg7: memref<3x32x32xf32, #tpu.memory_space<vmem>>, %arg8: memref<4x1x32xf32, #tpu.memory_space<vmem>>, %arg9: memref<32x128xf32, #tpu.memory_space<vmem>>, %arg10: memref<1x128xf32, #tpu.memory_space<vmem>>, %arg11: memref<1x8x128xf32, #tpu.memory_space<vmem>>, %arg12: memref<2x8x32xf32, #tpu.memory_space<vmem>>) attributes {dimension_semantics = [#tpu.dimension_semantics<arbitrary>], iteration_bounds = array<i64: 1>, scalar_prefetch = 0 : i64, scratch_operands = 0 : i64, tpu.core_type = #tpu.core_type<tc>, window_params = [{transform_indices = @transform_0, window_bounds = array<i64: 1, 8, 16>}, {pipeline_mode = #tpu.pipeline_mode<synchronous>, transform_indices = @transform_1, window_bounds = array<i64: 2, 8, 32>}, {pipeline_mode = #tpu.pipeline_mode<synchronous>, transform_indices = @transform_2, window_bounds = array<i64: 3, 16, 32>}, {pipeline_mode = #tpu.pipeline_mode<synchronous>, transform_indices = @transform_3, window_bounds = array<i64: 3, 32, 32>}, {pipeline_mode = #tpu.pipeline_mode<synchronous>, transform_indices = @transform_4, window_bounds = array<i64: 4, 1, 32>}, {pipeline_mode = #tpu.pipeline_mode<synchronous>, transform_indices = @transform_5, window_bounds = array<i64: 3, 32, 32>}, {pipeline_mode = #tpu.pipeline_mode<synchronous>, transform_indices = @transform_6, window_bounds = array<i64: 3, 32, 32>}, {pipeline_mode = #tpu.pipeline_mode<synchronous>, transform_indices = @transform_7, window_bounds = array<i64: 4, 1, 32>}, {pipeline_mode = #tpu.pipeline_mode<synchronous>, transform_indices = @transform_8, window_bounds = array<i64: 32, 128>}, {pipeline_mode = #tpu.pipeline_mode<synchronous>, transform_indices = @transform_9, window_bounds = array<i64: 1, 128>}, {transform_indices = @transform_10, window_bounds = array<i64: 1, 8, 128>}, {pipeline_mode = #tpu.pipeline_mode<synchronous>, transform_indices = @transform_11, window_bounds = array<i64: 2, 8, 32>}]} {
    %c0_i32 = arith.constant 0 : i32
    %0 = arith.cmpi eq, %arg0, %c0_i32 : i32
    %1 = arith.extui %0 : i1 to i32
    %c0_i32_0 = arith.constant 0 : i32
    %2 = arith.cmpi ne, %1, %c0_i32_0 : i32
    scf.if %2 {
      %c0_103 = arith.constant 0 : index
      %c0_104 = arith.constant 0 : index
      %c0_105 = arith.constant 0 : index
      %145 = vector.load %arg2[%c0_103, %c0_104, %c0_105] : memref<2x8x32xf32, #tpu.memory_space<vmem>>, vector<2x8x32xf32>
      %c0_106 = arith.constant 0 : index
      %c0_107 = arith.constant 0 : index
      %c0_108 = arith.constant 0 : index
      %146 = vector.load %arg12[%c0_106, %c0_107, %c0_108] : memref<2x8x32xf32, #tpu.memory_space<vmem>>, vector<2x8x32xf32>
      tpu.vector_store %arg12[%c0_106, %c0_107, %c0_108], %145 {strides = array<i32>} : memref<2x8x32xf32, #tpu.memory_space<vmem>>, vector<2x8x32xf32>,
    } else {
    }
    %c0 = arith.constant 0 : index
    %c0_1 = arith.constant 0 : index
    %c0_2 = arith.constant 0 : index
    %3 = vector.load %arg1[%c0, %c0_1, %c0_2] : memref<1x8x16xf32, #tpu.memory_space<vmem>>, vector<1x8x16xf32>
    %4 = vector.shape_cast %3 : vector<1x8x16xf32> to vector<8x16xf32>
    %c0_3 = arith.constant 0 : index
    %c0_4 = arith.constant 0 : index
    %c0_5 = arith.constant 0 : index
    %5 = vector.load %arg12[%c0_3, %c0_4, %c0_5] : memref<2x8x32xf32, #tpu.memory_space<vmem>>, vector<1x8x32xf32>
    %6 = vector.shape_cast %5 : vector<1x8x32xf32> to vector<8x32xf32>
    %c1 = arith.constant 1 : index
    %c0_6 = arith.constant 0 : index
    %c0_7 = arith.constant 0 : index
    %7 = vector.load %arg12[%c1, %c0_6, %c0_7] : memref<2x8x32xf32, #tpu.memory_space<vmem>>, vector<1x8x32xf32>
    %8 = vector.shape_cast %7 : vector<1x8x32xf32> to vector<8x32xf32>
    %c0_8 = arith.constant 0 : index
    %c0_9 = arith.constant 0 : index
    %c0_10 = arith.constant 0 : index
    %9 = vector.load %arg3[%c0_8, %c0_9, %c0_10] : memref<3x16x32xf32, #tpu.memory_space<vmem>>, vector<1x16x32xf32>
    %10 = vector.shape_cast %9 : vector<1x16x32xf32> to vector<16x32xf32>
    %cst = arith.constant dense<0.000000e+00> : vector<8x32xf32>
    %11 = tpu.matmul %4, %10, %cst {dimension_numbers = #tpu.dot_dimension_numbers<[1], [0], [0], [1], [0, 0, 1, 1], [], []>} : vector<8x16xf32>, vector<16x32xf32>, vector<8x32xf32> -> vector<8x32xf32>
    %c0_11 = arith.constant 0 : index
    %c0_12 = arith.constant 0 : index
    %c0_13 = arith.constant 0 : index
    %12 = vector.load %arg4[%c0_11, %c0_12, %c0_13] : memref<3x32x32xf32, #tpu.memory_space<vmem>>, vector<1x32x32xf32>
    %13 = vector.shape_cast %12 : vector<1x32x32xf32> to vector<32x32xf32>
    %cst_14 = arith.constant dense<0.000000e+00> : vector<8x32xf32>
    %14 = tpu.matmul %6, %13, %cst_14 {dimension_numbers = #tpu.dot_dimension_numbers<[1], [0], [0], [1], [0, 0, 1, 1], [], []>} : vector<8x32xf32>, vector<32x32xf32>, vector<8x32xf32> -> vector<8x32xf32>
    %15 = arith.addf %11, %14 : vector<8x32xf32>
    %c0_15 = arith.constant 0 : index
    %c0_16 = arith.constant 0 : index
    %c0_17 = arith.constant 0 : index
    %16 = vector.load %arg5[%c0_15, %c0_16, %c0_17] : memref<4x1x32xf32, #tpu.memory_space<vmem>>, vector<1x1x32xf32>
    %17 = vector.shape_cast %16 : vector<1x1x32xf32> to vector<1x32xf32>
    %18 = vector.broadcast %17 : vector<1x32xf32> to vector<8x32xf32>
    %19 = arith.addf %15, %18 : vector<8x32xf32>
    %cst_18 = arith.constant 0.000000e+00 : f32
    %20 = vector.broadcast %cst_18 : f32 to vector<8x32xf32>
    %21 = arith.subf %20, %19 : vector<8x32xf32>
    %22 = math.exp %21 : vector<8x32xf32>
    %cst_19 = arith.constant 1.000000e+00 : f32
    %23 = vector.broadcast %cst_19 : f32 to vector<8x32xf32>
    %24 = arith.addf %23, %22 : vector<8x32xf32>
    %25 = tpu.reciprocal %24 : vector<8x32xf32> -> vector<8x32xf32>
    %c1_20 = arith.constant 1 : index
    %c0_21 = arith.constant 0 : index
    %c0_22 = arith.constant 0 : index
    %26 = vector.load %arg3[%c1_20, %c0_21, %c0_22] : memref<3x16x32xf32, #tpu.memory_space<vmem>>, vector<1x16x32xf32>
    %27 = vector.shape_cast %26 : vector<1x16x32xf32> to vector<16x32xf32>
    %cst_23 = arith.constant dense<0.000000e+00> : vector<8x32xf32>
    %28 = tpu.matmul %4, %27, %cst_23 {dimension_numbers = #tpu.dot_dimension_numbers<[1], [0], [0], [1], [0, 0, 1, 1], [], []>} : vector<8x16xf32>, vector<16x32xf32>, vector<8x32xf32> -> vector<8x32xf32>
    %c1_24 = arith.constant 1 : index
    %c0_25 = arith.constant 0 : index
    %c0_26 = arith.constant 0 : index
    %29 = vector.load %arg4[%c1_24, %c0_25, %c0_26] : memref<3x32x32xf32, #tpu.memory_space<vmem>>, vector<1x32x32xf32>
    %30 = vector.shape_cast %29 : vector<1x32x32xf32> to vector<32x32xf32>
    %cst_27 = arith.constant dense<0.000000e+00> : vector<8x32xf32>
    %31 = tpu.matmul %6, %30, %cst_27 {dimension_numbers = #tpu.dot_dimension_numbers<[1], [0], [0], [1], [0, 0, 1, 1], [], []>} : vector<8x32xf32>, vector<32x32xf32>, vector<8x32xf32> -> vector<8x32xf32>
    %32 = arith.addf %28, %31 : vector<8x32xf32>
    %c1_28 = arith.constant 1 : index
    %c0_29 = arith.constant 0 : index
    %c0_30 = arith.constant 0 : index
    %33 = vector.load %arg5[%c1_28, %c0_29, %c0_30] : memref<4x1x32xf32, #tpu.memory_space<vmem>>, vector<1x1x32xf32>
    %34 = vector.shape_cast %33 : vector<1x1x32xf32> to vector<1x32xf32>
    %35 = vector.broadcast %34 : vector<1x32xf32> to vector<8x32xf32>
    %36 = arith.addf %32, %35 : vector<8x32xf32>
    %cst_31 = arith.constant 0.000000e+00 : f32
    %37 = vector.broadcast %cst_31 : f32 to vector<8x32xf32>
    %38 = arith.subf %37, %36 : vector<8x32xf32>
    %39 = math.exp %38 : vector<8x32xf32>
    %cst_32 = arith.constant 1.000000e+00 : f32
    %40 = vector.broadcast %cst_32 : f32 to vector<8x32xf32>
    %41 = arith.addf %40, %39 : vector<8x32xf32>
    %42 = tpu.reciprocal %41 : vector<8x32xf32> -> vector<8x32xf32>
    %c2 = arith.constant 2 : index
    %c0_33 = arith.constant 0 : index
    %c0_34 = arith.constant 0 : index
    %43 = vector.load %arg3[%c2, %c0_33, %c0_34] : memref<3x16x32xf32, #tpu.memory_space<vmem>>, vector<1x16x32xf32>
    %44 = vector.shape_cast %43 : vector<1x16x32xf32> to vector<16x32xf32>
    %cst_35 = arith.constant dense<0.000000e+00> : vector<8x32xf32>
    %45 = tpu.matmul %4, %44, %cst_35 {dimension_numbers = #tpu.dot_dimension_numbers<[1], [0], [0], [1], [0, 0, 1, 1], [], []>} : vector<8x16xf32>, vector<16x32xf32>, vector<8x32xf32> -> vector<8x32xf32>
    %c2_36 = arith.constant 2 : index
    %c0_37 = arith.constant 0 : index
    %c0_38 = arith.constant 0 : index
    %46 = vector.load %arg5[%c2_36, %c0_37, %c0_38] : memref<4x1x32xf32, #tpu.memory_space<vmem>>, vector<1x1x32xf32>
    %47 = vector.shape_cast %46 : vector<1x1x32xf32> to vector<1x32xf32>
    %48 = vector.broadcast %47 : vector<1x32xf32> to vector<8x32xf32>
    %49 = arith.addf %45, %48 : vector<8x32xf32>
    %c2_39 = arith.constant 2 : index
    %c0_40 = arith.constant 0 : index
    %c0_41 = arith.constant 0 : index
    %50 = vector.load %arg4[%c2_39, %c0_40, %c0_41] : memref<3x32x32xf32, #tpu.memory_space<vmem>>, vector<1x32x32xf32>
    %51 = vector.shape_cast %50 : vector<1x32x32xf32> to vector<32x32xf32>
    %cst_42 = arith.constant dense<0.000000e+00> : vector<8x32xf32>
    %52 = tpu.matmul %6, %51, %cst_42 {dimension_numbers = #tpu.dot_dimension_numbers<[1], [0], [0], [1], [0, 0, 1, 1], [], []>} : vector<8x32xf32>, vector<32x32xf32>, vector<8x32xf32> -> vector<8x32xf32>
    %c3 = arith.constant 3 : index
    %c0_43 = arith.constant 0 : index
    %c0_44 = arith.constant 0 : index
    %53 = vector.load %arg5[%c3, %c0_43, %c0_44] : memref<4x1x32xf32, #tpu.memory_space<vmem>>, vector<1x1x32xf32>
    %54 = vector.shape_cast %53 : vector<1x1x32xf32> to vector<1x32xf32>
    %55 = vector.broadcast %54 : vector<1x32xf32> to vector<8x32xf32>
    %56 = arith.addf %52, %55 : vector<8x32xf32>
    %57 = arith.mulf %25, %56 : vector<8x32xf32>
    %58 = arith.addf %49, %57 : vector<8x32xf32>
    %59 = math.tanh %58 : vector<8x32xf32>
    %cst_45 = arith.constant 1.000000e+00 : f32
    %60 = vector.broadcast %cst_45 : f32 to vector<8x32xf32>
    %61 = arith.subf %60, %42 : vector<8x32xf32>
    %62 = arith.mulf %61, %59 : vector<8x32xf32>
    %63 = arith.mulf %42, %6 : vector<8x32xf32>
    %64 = arith.addf %62, %63 : vector<8x32xf32>
    %c0_46 = arith.constant 0 : index
    %c0_47 = arith.constant 0 : index
    %c0_48 = arith.constant 0 : index
    %65 = vector.load %arg6[%c0_46, %c0_47, %c0_48] : memref<3x32x32xf32, #tpu.memory_space<vmem>>, vector<1x32x32xf32>
    %66 = vector.shape_cast %65 : vector<1x32x32xf32> to vector<32x32xf32>
    %cst_49 = arith.constant dense<0.000000e+00> : vector<8x32xf32>
    %67 = tpu.matmul %64, %66, %cst_49 {dimension_numbers = #tpu.dot_dimension_numbers<[1], [0], [0], [1], [0, 0, 1, 1], [], []>} : vector<8x32xf32>, vector<32x32xf32>, vector<8x32xf32> -> vector<8x32xf32>
    %c0_50 = arith.constant 0 : index
    %c0_51 = arith.constant 0 : index
    %c0_52 = arith.constant 0 : index
    %68 = vector.load %arg7[%c0_50, %c0_51, %c0_52] : memref<3x32x32xf32, #tpu.memory_space<vmem>>, vector<1x32x32xf32>
    %69 = vector.shape_cast %68 : vector<1x32x32xf32> to vector<32x32xf32>
    %cst_53 = arith.constant dense<0.000000e+00> : vector<8x32xf32>
    %70 = tpu.matmul %8, %69, %cst_53 {dimension_numbers = #tpu.dot_dimension_numbers<[1], [0], [0], [1], [0, 0, 1, 1], [], []>} : vector<8x32xf32>, vector<32x32xf32>, vector<8x32xf32> -> vector<8x32xf32>
    %71 = arith.addf %67, %70 : vector<8x32xf32>
    %c0_54 = arith.constant 0 : index
    %c0_55 = arith.constant 0 : index
    %c0_56 = arith.constant 0 : index
    %72 = vector.load %arg8[%c0_54, %c0_55, %c0_56] : memref<4x1x32xf32, #tpu.memory_space<vmem>>, vector<1x1x32xf32>
    %73 = vector.shape_cast %72 : vector<1x1x32xf32> to vector<1x32xf32>
    %74 = vector.broadcast %73 : vector<1x32xf32> to vector<8x32xf32>
    %75 = arith.addf %71, %74 : vector<8x32xf32>
    %cst_57 = arith.constant 0.000000e+00 : f32
    %76 = vector.broadcast %cst_57 : f32 to vector<8x32xf32>
    %77 = arith.subf %76, %75 : vector<8x32xf32>
    %78 = math.exp %77 : vector<8x32xf32>
    %cst_58 = arith.constant 1.000000e+00 : f32
    %79 = vector.broadcast %cst_58 : f32 to vector<8x32xf32>
    %80 = arith.addf %79, %78 : vector<8x32xf32>
    %81 = tpu.reciprocal %80 : vector<8x32xf32> -> vector<8x32xf32>
    %c1_59 = arith.constant 1 : index
    %c0_60 = arith.constant 0 : index
    %c0_61 = arith.constant 0 : index
    %82 = vector.load %arg6[%c1_59, %c0_60, %c0_61] : memref<3x32x32xf32, #tpu.memory_space<vmem>>, vector<1x32x32xf32>
    %83 = vector.shape_cast %82 : vector<1x32x32xf32> to vector<32x32xf32>
    %cst_62 = arith.constant dense<0.000000e+00> : vector<8x32xf32>
    %84 = tpu.matmul %64, %83, %cst_62 {dimension_numbers = #tpu.dot_dimension_numbers<[1], [0], [0], [1], [0, 0, 1, 1], [], []>} : vector<8x32xf32>, vector<32x32xf32>, vector<8x32xf32> -> vector<8x32xf32>
    %c1_63 = arith.constant 1 : index
    %c0_64 = arith.constant 0 : index
    %c0_65 = arith.constant 0 : index
    %85 = vector.load %arg7[%c1_63, %c0_64, %c0_65] : memref<3x32x32xf32, #tpu.memory_space<vmem>>, vector<1x32x32xf32>
    %86 = vector.shape_cast %85 : vector<1x32x32xf32> to vector<32x32xf32>
    %cst_66 = arith.constant dense<0.000000e+00> : vector<8x32xf32>
    %87 = tpu.matmul %8, %86, %cst_66 {dimension_numbers = #tpu.dot_dimension_numbers<[1], [0], [0], [1], [0, 0, 1, 1], [], []>} : vector<8x32xf32>, vector<32x32xf32>, vector<8x32xf32> -> vector<8x32xf32>
    %88 = arith.addf %84, %87 : vector<8x32xf32>
    %c1_67 = arith.constant 1 : index
    %c0_68 = arith.constant 0 : index
    %c0_69 = arith.constant 0 : index
    %89 = vector.load %arg8[%c1_67, %c0_68, %c0_69] : memref<4x1x32xf32, #tpu.memory_space<vmem>>, vector<1x1x32xf32>
    %90 = vector.shape_cast %89 : vector<1x1x32xf32> to vector<1x32xf32>
    %91 = vector.broadcast %90 : vector<1x32xf32> to vector<8x32xf32>
    %92 = arith.addf %88, %91 : vector<8x32xf32>
    %cst_70 = arith.constant 0.000000e+00 : f32
    %93 = vector.broadcast %cst_70 : f32 to vector<8x32xf32>
    %94 = arith.subf %93, %92 : vector<8x32xf32>
    %95 = math.exp %94 : vector<8x32xf32>
    %cst_71 = arith.constant 1.000000e+00 : f32
    %96 = vector.broadcast %cst_71 : f32 to vector<8x32xf32>
    %97 = arith.addf %96, %95 : vector<8x32xf32>
    %98 = tpu.reciprocal %97 : vector<8x32xf32> -> vector<8x32xf32>
    %c2_72 = arith.constant 2 : index
    %c0_73 = arith.constant 0 : index
    %c0_74 = arith.constant 0 : index
    %99 = vector.load %arg6[%c2_72, %c0_73, %c0_74] : memref<3x32x32xf32, #tpu.memory_space<vmem>>, vector<1x32x32xf32>
    %100 = vector.shape_cast %99 : vector<1x32x32xf32> to vector<32x32xf32>
    %cst_75 = arith.constant dense<0.000000e+00> : vector<8x32xf32>
    %101 = tpu.matmul %64, %100, %cst_75 {dimension_numbers = #tpu.dot_dimension_numbers<[1], [0], [0], [1], [0, 0, 1, 1], [], []>} : vector<8x32xf32>, vector<32x32xf32>, vector<8x32xf32> -> vector<8x32xf32>
    %c2_76 = arith.constant 2 : index
    %c0_77 = arith.constant 0 : index
    %c0_78 = arith.constant 0 : index
    %102 = vector.load %arg8[%c2_76, %c0_77, %c0_78] : memref<4x1x32xf32, #tpu.memory_space<vmem>>, vector<1x1x32xf32>
    %103 = vector.shape_cast %102 : vector<1x1x32xf32> to vector<1x32xf32>
    %104 = vector.broadcast %103 : vector<1x32xf32> to vector<8x32xf32>
    %105 = arith.addf %101, %104 : vector<8x32xf32>
    %c2_79 = arith.constant 2 : index
    %c0_80 = arith.constant 0 : index
    %c0_81 = arith.constant 0 : index
    %106 = vector.load %arg7[%c2_79, %c0_80, %c0_81] : memref<3x32x32xf32, #tpu.memory_space<vmem>>, vector<1x32x32xf32>
    %107 = vector.shape_cast %106 : vector<1x32x32xf32> to vector<32x32xf32>
    %cst_82 = arith.constant dense<0.000000e+00> : vector<8x32xf32>
    %108 = tpu.matmul %8, %107, %cst_82 {dimension_numbers = #tpu.dot_dimension_numbers<[1], [0], [0], [1], [0, 0, 1, 1], [], []>} : vector<8x32xf32>, vector<32x32xf32>, vector<8x32xf32> -> vector<8x32xf32>
    %c3_83 = arith.constant 3 : index
    %c0_84 = arith.constant 0 : index
    %c0_85 = arith.constant 0 : index
    %109 = vector.load %arg8[%c3_83, %c0_84, %c0_85] : memref<4x1x32xf32, #tpu.memory_space<vmem>>, vector<1x1x32xf32>
    %110 = vector.shape_cast %109 : vector<1x1x32xf32> to vector<1x32xf32>
    %111 = vector.broadcast %110 : vector<1x32xf32> to vector<8x32xf32>
    %112 = arith.addf %108, %111 : vector<8x32xf32>
    %113 = arith.mulf %81, %112 : vector<8x32xf32>
    %114 = arith.addf %105, %113 : vector<8x32xf32>
    %115 = math.tanh %114 : vector<8x32xf32>
    %cst_86 = arith.constant 1.000000e+00 : f32
    %116 = vector.broadcast %cst_86 : f32 to vector<8x32xf32>
    %117 = arith.subf %116, %98 : vector<8x32xf32>
    %118 = arith.mulf %117, %115 : vector<8x32xf32>
    %119 = arith.mulf %98, %8 : vector<8x32xf32>
    %120 = arith.addf %118, %119 : vector<8x32xf32>
    %c0_87 = arith.constant 0 : index
    %c0_88 = arith.constant 0 : index
    %121 = vector.load %arg9[%c0_87, %c0_88] : memref<32x128xf32, #tpu.memory_space<vmem>>, vector<32x128xf32>
    %cst_89 = arith.constant dense<0.000000e+00> : vector<8x128xf32>
    %122 = tpu.matmul %120, %121, %cst_89 {dimension_numbers = #tpu.dot_dimension_numbers<[1], [0], [0], [1], [0, 0, 1, 1], [], []>} : vector<8x32xf32>, vector<32x128xf32>, vector<8x128xf32> -> vector<8x128xf32>
    %c0_90 = arith.constant 0 : index
    %c0_91 = arith.constant 0 : index
    %123 = vector.load %arg10[%c0_90, %c0_91] : memref<1x128xf32, #tpu.memory_space<vmem>>, vector<1x128xf32>
    %124 = vector.broadcast %123 : vector<1x128xf32> to vector<8x128xf32>
    %125 = arith.addf %122, %124 : vector<8x128xf32>
    %cst_92 = arith.constant dense<0xFF800000> : vector<8xf32>
    %126 = vector.multi_reduction <maximumf>, %125, %cst_92 [1] : vector<8x128xf32> to vector<8xf32>
    %127 = vector.shape_cast %126 : vector<8xf32> to vector<8x1xf32>
    %128 = vector.broadcast %127 : vector<8x1xf32> to vector<8x128xf32>
    %129 = arith.subf %125, %128 : vector<8x128xf32>
    %130 = math.exp %129 : vector<8x128xf32>
    %cst_93 = arith.constant dense<0.000000e+00> : vector<8xf32>
    %131 = vector.multi_reduction <add>, %130, %cst_93 [1] : vector<8x128xf32> to vector<8xf32>
    %132 = vector.shape_cast %131 : vector<8xf32> to vector<8x1xf32>
    %133 = tpu.reciprocal %132 : vector<8x1xf32> -> vector<8x1xf32>
    %134 = vector.broadcast %133 : vector<8x1xf32> to vector<8x128xf32>
    %135 = arith.mulf %130, %134 : vector<8x128xf32>
    %c0_94 = arith.constant 0 : index
    %c0_95 = arith.constant 0 : index
    %c0_96 = arith.constant 0 : index
    %136 = vector.load %arg11[%c0_94, %c0_95, %c0_96] : memref<1x8x128xf32, #tpu.memory_space<vmem>>, vector<1x8x128xf32>
    %137 = vector.shape_cast %136 : vector<1x8x128xf32> to vector<8x128xf32>
    %138 = vector.shape_cast %135 : vector<8x128xf32> to vector<1x8x128xf32>
    tpu.vector_store %arg11[%c0_94, %c0_95, %c0_96], %138 {strides = array<i32>} : memref<1x8x128xf32, #tpu.memory_space<vmem>>, vector<1x8x128xf32>,
    %c0_97 = arith.constant 0 : index
    %c0_98 = arith.constant 0 : index
    %c0_99 = arith.constant 0 : index
    %139 = vector.load %arg12[%c0_97, %c0_98, %c0_99] : memref<2x8x32xf32, #tpu.memory_space<vmem>>, vector<1x8x32xf32>
    %140 = vector.shape_cast %139 : vector<1x8x32xf32> to vector<8x32xf32>
    %141 = vector.shape_cast %64 : vector<8x32xf32> to vector<1x8x32xf32>
    tpu.vector_store %arg12[%c0_97, %c0_98, %c0_99], %141 {strides = array<i32>} : memref<2x8x32xf32, #tpu.memory_space<vmem>>, vector<1x8x32xf32>,
    %c1_100 = arith.constant 1 : index
    %c0_101 = arith.constant 0 : index
    %c0_102 = arith.constant 0 : index
    %142 = vector.load %arg12[%c1_100, %c0_101, %c0_102] : memref<2x8x32xf32, #tpu.memory_space<vmem>>, vector<1x8x32xf32>
    %143 = vector.shape_cast %142 : vector<1x8x32xf32> to vector<8x32xf32>
    %144 = vector.shape_cast %120 : vector<8x32xf32> to vector<1x8x32xf32>
    tpu.vector_store %arg12[%c1_100, %c0_101, %c0_102], %144 {strides = array<i32>} : memref<2x8x32xf32, #tpu.memory_space<vmem>>, vector<1x8x32xf32>,
    return
  }
  func.func @transform_0(%arg0: i32) -> (i32, i32, i32) {
    %c0_i32 = arith.constant 0 : i32
    %c0_i32_0 = arith.constant 0 : i32
    %c0_i32_1 = arith.constant 0 : i32
    return %arg0, %c0_i32, %c0_i32_0 : i32, i32, i32
  }
  func.func @transform_1(%arg0: i32) -> (i32, i32, i32) {
    %c0_i32 = arith.constant 0 : i32
    %c0_i32_0 = arith.constant 0 : i32
    %c0_i32_1 = arith.constant 0 : i32
    %c0_i32_2 = arith.constant 0 : i32
    return %c0_i32, %c0_i32_0, %c0_i32_1 : i32, i32, i32
  }
  func.func @transform_2(%arg0: i32) -> (i32, i32, i32) {
    %c0_i32 = arith.constant 0 : i32
    %c0_i32_0 = arith.constant 0 : i32
    %c0_i32_1 = arith.constant 0 : i32
    %c0_i32_2 = arith.constant 0 : i32
    return %c0_i32, %c0_i32_0, %c0_i32_1 : i32, i32, i32
  }
  func.func @transform_3(%arg0: i32) -> (i32, i32, i32) {
    %c0_i32 = arith.constant 0 : i32
    %c0_i32_0 = arith.constant 0 : i32
    %c0_i32_1 = arith.constant 0 : i32
    %c0_i32_2 = arith.constant 0 : i32
    return %c0_i32, %c0_i32_0, %c0_i32_1 : i32, i32, i32
  }
  func.func @transform_4(%arg0: i32) -> (i32, i32, i32) {
    %c0_i32 = arith.constant 0 : i32
    %c0_i32_0 = arith.constant 0 : i32
    %c0_i32_1 = arith.constant 0 : i32
    %c0_i32_2 = arith.constant 0 : i32
    return %c0_i32, %c0_i32_0, %c0_i32_1 : i32, i32, i32
  }
  func.func @transform_5(%arg0: i32) -> (i32, i32, i32) {
    %c0_i32 = arith.constant 0 : i32
    %c0_i32_0 = arith.constant 0 : i32
    %c0_i32_1 = arith.constant 0 : i32
    %c0_i32_2 = arith.constant 0 : i32
    return %c0_i32, %c0_i32_0, %c0_i32_1 : i32, i32, i32
  }
  func.func @transform_6(%arg0: i32) -> (i32, i32, i32) {
    %c0_i32 = arith.constant 0 : i32
    %c0_i32_0 = arith.constant 0 : i32
    %c0_i32_1 = arith.constant 0 : i32
    %c0_i32_2 = arith.constant 0 : i32
    return %c0_i32, %c0_i32_0, %c0_i32_1 : i32, i32, i32
  }
  func.func @transform_7(%arg0: i32) -> (i32, i32, i32) {
    %c0_i32 = arith.constant 0 : i32
    %c0_i32_0 = arith.constant 0 : i32
    %c0_i32_1 = arith.constant 0 : i32
    %c0_i32_2 = arith.constant 0 : i32
    return %c0_i32, %c0_i32_0, %c0_i32_1 : i32, i32, i32
  }
  func.func @transform_8(%arg0: i32) -> (i32, i32) {
    %c0_i32 = arith.constant 0 : i32
    %c0_i32_0 = arith.constant 0 : i32
    %c0_i32_1 = arith.constant 0 : i32
    return %c0_i32, %c0_i32_0 : i32, i32
  }
  func.func @transform_9(%arg0: i32) -> (i32, i32) {
    %c0_i32 = arith.constant 0 : i32
    %c0_i32_0 = arith.constant 0 : i32
    %c0_i32_1 = arith.constant 0 : i32
    return %c0_i32, %c0_i32_0 : i32, i32
  }
  func.func @transform_10(%arg0: i32) -> (i32, i32, i32) {
    %c0_i32 = arith.constant 0 : i32
    %c0_i32_0 = arith.constant 0 : i32
    %c0_i32_1 = arith.constant 0 : i32
    return %arg0, %c0_i32, %c0_i32_0 : i32, i32, i32
  }
  func.func @transform_11(%arg0: i32) -> (i32, i32, i32) {
    %c0_i32 = arith.constant 0 : i32
    %c0_i32_0 = arith.constant 0 : i32
    %c0_i32_1 = arith.constant 0 : i32
    %c0_i32_2 = arith.constant 0 : i32
    return %c0_i32, %c0_i32_0, %c0_i32_1 : i32, i32, i32
  }
}

</mosaic_0001>

<llo_original>
// kernel: tpu_custom_call.1
$region0: #{tpu_custom_call.1}
  #allocation0 [shape = 'u32[]', space=smem, size = 0x4, offset = 0x4, fixed_abs, tag = 'smem constant byte address 0x4 - core index']
  #allocation1 [shape = 'u32[144,128]{1,0:T(1,128)}', space=vmem, size = 0x12000, scoped, tag = 'internal scratch']
  %s0 = inlined_call_operand.vmem [shape: f32[1,8,16], index: 0, kind: input, shape index: {}]
  %s1 = inlined_call_operand.hbm [shape: f32[2,8,32], index: 1, kind: input, shape index: {}, may-alias: {1,11}]
  %s2 = inlined_call_operand.vmem [shape: f32[3,16,32], index: 2, kind: input, shape index: {}]
  %s3 = inlined_call_operand.hbm [shape: f32[3,32,32], index: 3, kind: input, shape index: {}]
  %s4 = inlined_call_operand.hbm [shape: f32[4,1,32], index: 4, kind: input, shape index: {}]
  %s5 = inlined_call_operand.hbm [shape: f32[3,32,32], index: 5, kind: input, shape index: {}]
  %s6 = inlined_call_operand.hbm [shape: f32[3,32,32], index: 6, kind: input, shape index: {}]
  %s7 = inlined_call_operand.hbm [shape: f32[4,1,32], index: 7, kind: input, shape index: {}]
  %s8 = inlined_call_operand.hbm [shape: f32[32,128], index: 8, kind: input, shape index: {}]
  %s9 = inlined_call_operand.vmem [shape: f32[1,128], index: 9, kind: input, shape index: {}]
  %s10 = inlined_call_operand.hbm [shape: f32[1,8,128], index: 10, kind: output, shape index: {0}]
  %s11 = inlined_call_operand.hbm [shape: f32[2,8,32], index: 11, kind: output, shape index: {1}, may-alias: {1,11}]
  %12 = xla_tuple %s10, %s11
  %s13 = sld [smem:[#allocation0]]
  $region90: #{tpu_custom_call.1} parent=0
    _
  %s15 = ssub.s32 1, %s13
  %s16 = scalar_select 0, %s15, %s13
  $region1: #{tpu_custom_call.1} parent=0
    #allocation2 [shape = 'u8[8192]{0}', space=vmem, size = 0x2000, scoped, tag = 'input window, operand 1, single buffered']
    #allocation3 [shape = 's32[1]{0}', space=sflag, size = 0x4, scoped, tag = 'scoped memory for tpu_custom_call.1']
    #allocation4 [shape = 's32[1]{0}', space=sflag, size = 0x4, scoped, tag = 'scoped memory for tpu_custom_call.1']
    #allocation5 [shape = 'u8[49152]{0}', space=vmem, size = 0xc000, scoped, tag = 'input window, operand 3, single buffered']
    #allocation6 [shape = 's32[1]{0}', space=sflag, size = 0x4, scoped, tag = 'scoped memory for tpu_custom_call.1']
    #allocation7 [shape = 'u8[2048]{0}', space=vmem, size = 0x800, scoped, tag = 'input window, operand 4, single buffered']
    #allocation8 [shape = 'u8[49152]{0}', space=vmem, size = 0xc000, scoped, tag = 'input window, operand 5, single buffered']
    #allocation9 [shape = 's32[1]{0}', space=sflag, size = 0x4, scoped, tag = 'scoped memory for tpu_custom_call.1']
    #allocation10 [shape = 'u8[49152]{0}', space=vmem, size = 0xc000, scoped, tag = 'input window, operand 6, single buffered']
    #allocation11 [shape = 'u8[2048]{0}', space=vmem, size = 0x800, scoped, tag = 'input window, operand 7, single buffered']
    #allocation12 [shape = 's32[1]{0}', space=sflag, size = 0x4, scoped, tag = 'scoped memory for tpu_custom_call.1']
    #allocation13 [shape = 'u8[16384]{0}', space=vmem, size = 0x4000, scoped, tag = 'input window, operand 8, single buffered']
    #allocation14 [shape = 'u8[4096]{0}', space=vmem, size = 0x1000, scoped, tag = 'output window, operand 0, single buffered']
    #allocation15 [shape = 'u8[8192]{0}', space=vmem, size = 0x2000, scoped, tag = 'output window, operand 1, single buffered']
    #allocation16 [shape = 's32[1]{0}', space=sflag, size = 0x4, scoped, tag = 'scoped memory for tpu_custom_call.1']
    %17 = vsyncpa [#allocation3], 0
    %18 = vsyncpa [#allocation6], 0
    %19 = vsyncpa [#allocation9], 0
    %20 = vsyncpa [#allocation12], 0
    %21 = vsyncpa [#allocation4], 0
    %22 = vsyncpa [#allocation16], 0
    // Predicated region
    $region2: #{tpu_custom_call.1} parent=1 // pred_check
      _
    $region3: #{tpu_custom_call.1} parent=1 // pred_check_branch
      %24 = sbr.rel (0) target = $region5
    $region4: #{tpu_custom_call.1} parent=1 // pred_region
      _
    $region5: #{tpu_custom_call.1} parent=1 // pred_fallthru
      _
    // Predicated region
    $region6: #{tpu_custom_call.1} parent=1 // pred_check
      _
    $region7: #{tpu_custom_call.1} parent=1 // pred_check_branch
      %26 = sbr.rel (0) target = $region9
    $region8: #{tpu_custom_call.1} parent=1 // pred_region
      %s28 = ssub.s32 256, 256
      %29 = vsyncadd [#allocation3], %s28
      %s30 = sshll.u32 [#allocation2], 4
      %s31 = int_to_ptr.vmem [resolvable:$true] %s30
      %36 = dma.hbm_to_vmem [thread:$0]  %s1, 256, %s31, [#allocation3], 128, 128, 8
    $region9: #{tpu_custom_call.1} parent=1 // pred_fallthru
      _
    // Predicated region
    $region10: #{tpu_custom_call.1} parent=1 // pred_check
      _
    $region11: #{tpu_custom_call.1} parent=1 // pred_check_branch
      %38 = sbr.rel (0) target = $region13
    $region12: #{tpu_custom_call.1} parent=1 // pred_region
      _
    $region13: #{tpu_custom_call.1} parent=1 // pred_fallthru
      _
    // Predicated region
    $region14: #{tpu_custom_call.1} parent=1 // pred_check
      _
    $region15: #{tpu_custom_call.1} parent=1 // pred_check_branch
      %40 = sbr.rel (0) target = $region17
    $region16: #{tpu_custom_call.1} parent=1 // pred_region
      %s42 = ssub.s32 1536, 1536
      %43 = vsyncadd [#allocation6], %s42
      %s44 = sshll.u32 [#allocation5], 4
      %s45 = int_to_ptr.vmem [resolvable:$true] %s44
      %50 = dma.hbm_to_vmem [thread:$0]  %s3, 1536, %s45, [#allocation6], 128, 128, 8
    $region17: #{tpu_custom_call.1} parent=1 // pred_fallthru
      _
    // Predicated region
    $region18: #{tpu_custom_call.1} parent=1 // pred_check
      _
    $region19: #{tpu_custom_call.1} parent=1 // pred_check_branch
      %52 = sbr.rel (0) target = $region21
    $region20: #{tpu_custom_call.1} parent=1 // pred_region
      %s54 = ssub.s32 64, 64
      %55 = vsyncadd [#allocation6], %s54
      %s56 = sshll.u32 [#allocation7], 4
      %s57 = int_to_ptr.vmem [resolvable:$true] %s56
      %62 = dma.hbm_to_vmem [thread:$0]  %s4, 64, %s57, [#allocation6], 16, 16, 1
    $region21: #{tpu_custom_call.1} parent=1 // pred_fallthru
      _
    // Predicated region
    $region22: #{tpu_custom_call.1} parent=1 // pred_check
      _
    $region23: #{tpu_custom_call.1} parent=1 // pred_check_branch
      %64 = sbr.rel (0) target = $region25
    $region24: #{tpu_custom_call.1} parent=1 // pred_region
      %s66 = ssub.s32 1536, 1536
      %67 = vsyncadd [#allocation9], %s66
      %s68 = sshll.u32 [#allocation8], 4
      %s69 = int_to_ptr.vmem [resolvable:$true] %s68
      %74 = dma.hbm_to_vmem [thread:$0]  %s5, 1536, %s69, [#allocation9], 128, 128, 8
    $region25: #{tpu_custom_call.1} parent=1 // pred_fallthru
      _
    // Predicated region
    $region26: #{tpu_custom_call.1} parent=1 // pred_check
      _
    $region27: #{tpu_custom_call.1} parent=1 // pred_check_branch
      %76 = sbr.rel (0) target = $region29
    $region28: #{tpu_custom_call.1} parent=1 // pred_region
      %s78 = ssub.s32 1536, 1536
      %79 = vsyncadd [#allocation9], %s78
      %s80 = sshll.u32 [#allocation10], 4
      %s81 = int_to_ptr.vmem [resolvable:$true] %s80
      %86 = dma.hbm_to_vmem [thread:$0]  %s6, 1536, %s81, [#allocation9], 128, 128, 8
    $region29: #{tpu_custom_call.1} parent=1 // pred_fallthru
      _
    // Predicated region
    $region30: #{tpu_custom_call.1} parent=1 // pred_check
      _
    $region31: #{tpu_custom_call.1} parent=1 // pred_check_branch
      %88 = sbr.rel (0) target = $region33
    $region32: #{tpu_custom_call.1} parent=1 // pred_region
      %s90 = ssub.s32 64, 64
      %91 = vsyncadd [#allocation12], %s90
      %s92 = sshll.u32 [#allocation11], 4
      %s93 = int_to_ptr.vmem [resolvable:$true] %s92
      %98 = dma.hbm_to_vmem [thread:$0]  %s7, 64, %s93, [#allocation12], 16, 16, 1
    $region33: #{tpu_custom_call.1} parent=1 // pred_fallthru
      _
    // Predicated region
    $region34: #{tpu_custom_call.1} parent=1 // pred_check
      _
    $region35: #{tpu_custom_call.1} parent=1 // pred_check_branch
      %100 = sbr.rel (0) target = $region37
    $region36: #{tpu_custom_call.1} parent=1 // pred_region
      %s102 = ssub.s32 512, 512
      %103 = vsyncadd [#allocation12], %s102
      %s104 = sshll.u32 [#allocation13], 4
      %s105 = int_to_ptr.vmem [resolvable:$true] %s104
      %110 = dma.hbm_to_vmem [thread:$0]  %s8, 512, %s105, [#allocation12], 128, 128, 8
    $region37: #{tpu_custom_call.1} parent=1 // pred_fallthru
      _
    // Predicated region
    $region38: #{tpu_custom_call.1} parent=1 // pred_check
      _
    $region39: #{tpu_custom_call.1} parent=1 // pred_check_branch
      %112 = sbr.rel (0) target = $region41
    $region40: #{tpu_custom_call.1} parent=1 // pred_region
      _
    $region41: #{tpu_custom_call.1} parent=1 // pred_fallthru
      _
    // Predicated region
    $region42: #{tpu_custom_call.1} parent=1 // pred_check
      _
    $region43: #{tpu_custom_call.1} parent=1 // pred_check_branch
      %114 = sbr.rel (0) target = $region45
    $region44: #{tpu_custom_call.1} parent=1 // pred_region
      %115 = dma.done [#allocation3], 256
    $region45: #{tpu_custom_call.1} parent=1 // pred_fallthru
      _
    // Predicated region
    $region46: #{tpu_custom_call.1} parent=1 // pred_check
      _
    $region47: #{tpu_custom_call.1} parent=1 // pred_check_branch
      %117 = sbr.rel (0) target = $region49
    $region48: #{tpu_custom_call.1} parent=1 // pred_region
      %118 = dma.done [#allocation6], 1536
    $region49: #{tpu_custom_call.1} parent=1 // pred_fallthru
      _
    // Predicated region
    $region50: #{tpu_custom_call.1} parent=1 // pred_check
      _
    $region51: #{tpu_custom_call.1} parent=1 // pred_check_branch
      %120 = sbr.rel (0) target = $region53
    $region52: #{tpu_custom_call.1} parent=1 // pred_region
      %121 = dma.done [#allocation6], 64
    $region53: #{tpu_custom_call.1} parent=1 // pred_fallthru
      _
    // Predicated region
    $region54: #{tpu_custom_call.1} parent=1 // pred_check
      _
    $region55: #{tpu_custom_call.1} parent=1 // pred_check_branch
      %123 = sbr.rel (0) target = $region57
    $region56: #{tpu_custom_call.1} parent=1 // pred_region
      %124 = dma.done [#allocation9], 1536
    $region57: #{tpu_custom_call.1} parent=1 // pred_fallthru
      _
    // Predicated region
    $region58: #{tpu_custom_call.1} parent=1 // pred_check
      _
    $region59: #{tpu_custom_call.1} parent=1 // pred_check_branch
      %126 = sbr.rel (0) target = $region61
    $region60: #{tpu_custom_call.1} parent=1 // pred_region
      %127 = dma.done [#allocation9], 1536
    $region61: #{tpu_custom_call.1} parent=1 // pred_fallthru
      _
    // Predicated region
    $region62: #{tpu_custom_call.1} parent=1 // pred_check
      _
    $region63: #{tpu_custom_call.1} parent=1 // pred_check_branch
      %129 = sbr.rel (0) target = $region65
    $region64: #{tpu_custom_call.1} parent=1 // pred_region
      %130 = dma.done [#allocation12], 64
    $region65: #{tpu_custom_call.1} parent=1 // pred_fallthru
      _
    // Predicated region
    $region66: #{tpu_custom_call.1} parent=1 // pred_check
      _
    $region67: #{tpu_custom_call.1} parent=1 // pred_check_branch
      %132 = sbr.rel (0) target = $region69
    $region68: #{tpu_custom_call.1} parent=1 // pred_region
      %133 = dma.done [#allocation12], 512
    $region69: #{tpu_custom_call.1} parent=1 // pred_fallthru
      _
    %p134 = scmp.eq.s32.totalorder 0, 0
    // Predicated region
    $region70: #{tpu_custom_call.1} parent=1 // pred_check
      %p135 = pneg %p134
    $region71: #{tpu_custom_call.1} parent=1 // pred_check_branch
      %137 = sbr.rel (%p135) target = $region73
    $region72: #{tpu_custom_call.1} parent=1 // pred_region
      %v138 = vld [vmem:[#allocation2] sm:$0xff]
      %v139 = vld [vmem:[#allocation2 + $0x8] sm:$0xff]
      %vm140 = vcmask 261120
      %141 = vst.msk [vmem:[#allocation15] sm:$0xff] %vm140, %v138
      %142 = vst.msk [vmem:[#allocation15 + $0x8] sm:$0xff] %vm140, %v139
    $region73: #{tpu_custom_call.1} parent=1 // pred_fallthru
      _
    %v143 = vld [vmem:[%s0] sm:$0xff]
    %v144 = vld [vmem:[#allocation15] sm:$0xff]
    %s145 = scalar_lea.vmem [#allocation15], 8
    %v146 = vld [vmem:[%s145] sm:$0xff]
    %v147 = vld [vmem:[%s2] sm:$0xff]
    %v148 = vld [vmem:[%s2 + $0x8] sm:$0xff]
    %v149 = vld [vmem:[#allocation5] sm:$0xff]
    %v150 = vld [vmem:[#allocation5 + $0x8] sm:$0xff]
    %v151 = vld [vmem:[#allocation5 + $0x10] sm:$0xff]
    %v152 = vld [vmem:[#allocation5 + $0x18] sm:$0xff]
    %vm153 = vcmask 261120
    %v155 = vsel %vm153, %v144, 0
    %157 = vmatprep.subr.mxu0 0.0
    %158 = vmatpush1.msra.mxu0 %v149
    %159 = vmatprep.subr.mxu0 0.0
    %160 = vmatpush1.msra.mxu0 %v150
    %161 = vmatprep.subr.mxu0 0.0
    %162 = vmatpush1.msra.mxu0 %v151
    %163 = vmatprep.subr.mxu0 0.0
    %164 = vmatpush1.msra.mxu0 %v152
    %165 = vmatprep.subr.mxu0 0.0
    %166 = vmatpush1.msra.mxu0 0.0
    %167 = vmatprep.subr.mxu0 0.0
    %168 = vmatpush1.msra.mxu0 0.0
    %169 = vmatprep.subr.mxu0 0.0
    %170 = vmatpush1.msra.mxu0 0.0
    %171 = vmatprep.subr.mxu0 0.0
    %172 = vmatpush1.msra.mxu0 0.0
    %173 = vmatprep.subr.mxu0 0.0
    %174 = vmatpush1.msra.mxu0 0.0
    %175 = vmatprep.subr.mxu0 0.0
    %176 = vmatpush1.msra.mxu0 0.0
    %177 = vmatprep.subr.mxu0 0.0
    %178 = vmatpush1.msra.mxu0 0.0
    %179 = vmatprep.subr.mxu0 0.0
    %180 = vmatpush1.msra.mxu0 0.0
    %181 = vmatprep.subr.mxu0 0.0
    %182 = vmatpush1.msra.mxu0 0.0
    %183 = vmatprep.subr.mxu0 0.0
    %184 = vmatpush1.msra.mxu0 0.0
    %185 = vmatprep.subr.mxu0 0.0
    %186 = vmatpush1.msra.mxu0 0.0
    %187 = vmatprep.subr.mxu0 0.0
    %188 = vmatpush1.msra.mxu0 0.0
    %189 = vmatprep.subr.mxu0 0.0
    %190 = vmatpush1.msra.mxu0 0.0
    %191 = vmatprep.subr.mxu0 0.0
    %192 = vmatpush1.msra.mxu0 0.0
    %193 = vmatprep.subr.mxu0 0.0
    %194 = vmatpush1.msra.mxu0 0.0
    %195 = vmatprep.subr.mxu0 0.0
    %196 = vmatpush1.msra.mxu0 0.0
    %197 = vmatprep.subr.mxu0 0.0
    %198 = vmatpush1.msra.mxu0 0.0
    %199 = vmatprep.subr.mxu0 0.0
    %200 = vmatpush1.msra.mxu0 0.0
    %201 = vmatprep.subr.mxu0 0.0
    %202 = vmatpush1.msra.mxu0 0.0
    %203 = vmatprep.subr.mxu0 0.0
    %204 = vmatpush1.msra.mxu0 0.0
    %205 = vmatprep.subr.mxu0 0.0
    %206 = vmatpush1.msra.mxu0 0.0
    %207 = vmatprep.subr.mxu0 0.0
    %208 = vmatpush1.msra.mxu0 0.0
    %209 = vmatprep.subr.mxu0 0.0
    %210 = vmatpush1.msra.mxu0 0.0
    %211 = vmatprep.subr.mxu0 0.0
    %212 = vmatpush1.msra.mxu0 0.0
    %213 = vmatprep.subr.mxu0 0.0
    %214 = vmatpush1.msra.mxu0 0.0
    %215 = vmatprep.subr.mxu0 0.0
    %216 = vmatpush1.msra.mxu0 0.0
    %217 = vmatprep.subr.mxu0 0.0
    %218 = vmatpush1.msra.mxu0 0.0
    %219 = vmatprep.subr.mxu0 0.0
    %220 = vmatpush1.msra.mxu0 0.0
    %221 = vmatprep.mubr.f32.mxu0 0.0
    %222 = vmatmul.mubr.f32.gmra.mrb[0].mxu0 %v155
    %v223 = vpop.f32.mrb[0].mxu0
    %v224 = vadd.f32 0.0, %v223
    %v225 = vpop.f32.mrb[0].mxu0
    %226 = vdwg.mxu0
    %vm227 = vcmask 130048
    %v229 = vsel %vm227, %v143, 0
    %231 = vmatprep.subr.mxu0 0.0
    %232 = vmatpush1.msra.mxu0 %v147
    %233 = vmatprep.subr.mxu0 0.0
    %234 = vmatpush1.msra.mxu0 %v148
    %235 = vmatprep.subr.mxu0 0.0
    %236 = vmatpush1.msra.mxu0 0.0
    %237 = vmatprep.subr.mxu0 0.0
    %238 = vmatpush1.msra.mxu0 0.0
    %239 = vmatprep.subr.mxu0 0.0
    %240 = vmatpush1.msra.mxu0 0.0
    %241 = vmatprep.subr.mxu0 0.0
    %242 = vmatpush1.msra.mxu0 0.0
    %243 = vmatprep.subr.mxu0 0.0
    %244 = vmatpush1.msra.mxu0 0.0
    %245 = vmatprep.subr.mxu0 0.0
    %246 = vmatpush1.msra.mxu0 0.0
    %247 = vmatprep.subr.mxu0 0.0
    %248 = vmatpush1.msra.mxu0 0.0
    %249 = vmatprep.subr.mxu0 0.0
    %250 = vmatpush1.msra.mxu0 0.0
    %251 = vmatprep.subr.mxu0 0.0
    %252 = vmatpush1.msra.mxu0 0.0
    %253 = vmatprep.subr.mxu0 0.0
    %254 = vmatpush1.msra.mxu0 0.0
    %255 = vmatprep.subr.mxu0 0.0
    %256 = vmatpush1.msra.mxu0 0.0
    %257 = vmatprep.subr.mxu0 0.0
    %258 = vmatpush1.msra.mxu0 0.0
    %259 = vmatprep.subr.mxu0 0.0
    %260 = vmatpush1.msra.mxu0 0.0
    %261 = vmatprep.subr.mxu0 0.0
    %262 = vmatpush1.msra.mxu0 0.0
    %263 = vmatprep.subr.mxu0 0.0
    %264 = vmatpush1.msra.mxu0 0.0
    %265 = vmatprep.subr.mxu0 0.0
    %266 = vmatpush1.msra.mxu0 0.0
    %267 = vmatprep.subr.mxu0 0.0
    %268 = vmatpush1.msra.mxu0 0.0
    %269 = vmatprep.subr.mxu0 0.0
    %270 = vmatpush1.msra.mxu0 0.0
    %271 = vmatprep.subr.mxu0 0.0
    %272 = vmatpush1.msra.mxu0 0.0
    %273 = vmatprep.subr.mxu0 0.0
    %274 = vmatpush1.msra.mxu0 0.0
    %275 = vmatprep.subr.mxu0 0.0
    %276 = vmatpush1.msra.mxu0 0.0
    %277 = vmatprep.subr.mxu0 0.0
    %278 = vmatpush1.msra.mxu0 0.0
    %279 = vmatprep.subr.mxu0 0.0
    %280 = vmatpush1.msra.mxu0 0.0
    %281 = vmatprep.subr.mxu0 0.0
    %282 = vmatpush1.msra.mxu0 0.0
    %283 = vmatprep.subr.mxu0 0.0
    %284 = vmatpush1.msra.mxu0 0.0
    %285 = vmatprep.subr.mxu0 0.0
    %286 = vmatpush1.msra.mxu0 0.0
    %287 = vmatprep.subr.mxu0 0.0
    %288 = vmatpush1.msra.mxu0 0.0
    %289 = vmatprep.subr.mxu0 0.0
    %290 = vmatpush1.msra.mxu0 0.0
    %291 = vmatprep.subr.mxu0 0.0
    %292 = vmatpush1.msra.mxu0 0.0
    %293 = vmatprep.subr.mxu0 0.0
    %294 = vmatpush1.msra.mxu0 0.0
    %295 = vmatprep.mubr.f32.mxu0 0.0
    %296 = vmatmul.mubr.f32.gmra.mrb[0].mxu0 %v229
    %v297 = vpop.f32.mrb[0].mxu0
    %v298 = vadd.f32 %v224, %v297
    %v299 = vpop.f32.mrb[0].mxu0
    %300 = vdwg.mxu0
    %v301 = vld [vmem:[#allocation7] sm:$0x1]
    %v303 = vlaneseq
    %v304 = vshrl.u32 %v303, 7
    %v305 = vsub.s32 0, %v304
    %v306 = vrot.slane %v301, %v305
    %v308 = vadd.f32 %v298, %v306
    %v309 = vsub.f32 0.0, %v308
    %v310 = vmul.f32 %v309, 1.442695
    %v311 = vpow.pop %v310
    %v312 = vadd.f32 %v311, 1.0
    %v313 = vrcp.pop %v312
    %s314 = scalar_lea.vmem %s2, 16
    %v315 = vld [vmem:[%s314] sm:$0xff]
    %v316 = vld [vmem:[%s314 + $0x8] sm:$0xff]
    %s317 = scalar_lea.vmem [#allocation5], 32
    %v318 = vld [vmem:[%s317] sm:$0xff]
    %v319 = vld [vmem:[%s317 + $0x8] sm:$0xff]
    %v320 = vld [vmem:[%s317 + $0x10] sm:$0xff]
    %v321 = vld [vmem:[%s317 + $0x18] sm:$0xff]
    %322 = vmatprep.subr.mxu0 0.0
    %323 = vmatpush1.msra.mxu0 %v318
    %324 = vmatprep.subr.mxu0 0.0
    %325 = vmatpush1.msra.mxu0 %v319
    %326 = vmatprep.subr.mxu0 0.0
    %327 = vmatpush1.msra.mxu0 %v320
    %328 = vmatprep.subr.mxu0 0.0
    %329 = vmatpush1.msra.mxu0 %v321
    %330 = vmatprep.subr.mxu0 0.0
    %331 = vmatpush1.msra.mxu0 0.0
    %332 = vmatprep.subr.mxu0 0.0
    %333 = vmatpush1.msra.mxu0 0.0
    %334 = vmatprep.subr.mxu0 0.0
    %335 = vmatpush1.msra.mxu0 0.0
    %336 = vmatprep.subr.mxu0 0.0
    %337 = vmatpush1.msra.mxu0 0.0
    %338 = vmatprep.subr.mxu0 0.0
    %339 = vmatpush1.msra.mxu0 0.0
    %340 = vmatprep.subr.mxu0 0.0
    %341 = vmatpush1.msra.mxu0 0.0
    %342 = vmatprep.subr.mxu0 0.0
    %343 = vmatpush1.msra.mxu0 0.0
    %344 = vmatprep.subr.mxu0 0.0
    %345 = vmatpush1.msra.mxu0 0.0
    %346 = vmatprep.subr.mxu0 0.0
    %347 = vmatpush1.msra.mxu0 0.0
    %348 = vmatprep.subr.mxu0 0.0
    %349 = vmatpush1.msra.mxu0 0.0
    %350 = vmatprep.subr.mxu0 0.0
    %351 = vmatpush1.msra.mxu0 0.0
    %352 = vmatprep.subr.mxu0 0.0
    %353 = vmatpush1.msra.mxu0 0.0
    %354 = vmatprep.subr.mxu0 0.0
    %355 = vmatpush1.msra.mxu0 0.0
    %356 = vmatprep.subr.mxu0 0.0
    %357 = vmatpush1.msra.mxu0 0.0
    %358 = vmatprep.subr.mxu0 0.0
    %359 = vmatpush1.msra.mxu0 0.0
    %360 = vmatprep.subr.mxu0 0.0
    %361 = vmatpush1.msra.mxu0 0.0
    %362 = vmatprep.subr.mxu0 0.0
    %363 = vmatpush1.msra.mxu0 0.0
    %364 = vmatprep.subr.mxu0 0.0
    %365 = vmatpush1.msra.mxu0 0.0
    %366 = vmatprep.subr.mxu0 0.0
    %367 = vmatpush1.msra.mxu0 0.0
    %368 = vmatprep.subr.mxu0 0.0
    %369 = vmatpush1.msra.mxu0 0.0
    %370 = vmatprep.subr.mxu0 0.0
    %371 = vmatpush1.msra.mxu0 0.0
    %372 = vmatprep.subr.mxu0 0.0
    %373 = vmatpush1.msra.mxu0 0.0
    %374 = vmatprep.subr.mxu0 0.0
    %375 = vmatpush1.msra.mxu0 0.0
    %376 = vmatprep.subr.mxu0 0.0
    %377 = vmatpush1.msra.mxu0 0.0
    %378 = vmatprep.subr.mxu0 0.0
    %379 = vmatpush1.msra.mxu0 0.0
    %380 = vmatprep.subr.mxu0 0.0
    %381 = vmatpush1.msra.mxu0 0.0
    %382 = vmatprep.subr.mxu0 0.0
    %383 = vmatpush1.msra.mxu0 0.0
    %384 = vmatprep.subr.mxu0 0.0
    %385 = vmatpush1.msra.mxu0 0.0
    %386 = vmatprep.mubr.f32.mxu0 0.0
    %387 = vmatmul.mubr.f32.gmra.mrb[0].mxu0 %v155
    %v388 = vpop.f32.mrb[0].mxu0
    %v389 = vadd.f32 0.0, %v388
    %v390 = vpop.f32.mrb[0].mxu0
    %391 = vdwg.mxu0
    %392 = vmatprep.subr.mxu0 0.0
    %393 = vmatpush1.msra.mxu0 %v315
    %394 = vmatprep.subr.mxu0 0.0
    %395 = vmatpush1.msra.mxu0 %v316
    %396 = vmatprep.subr.mxu0 0.0
    %397 = vmatpush1.msra.mxu0 0.0
    %398 = vmatprep.subr.mxu0 0.0
    %399 = vmatpush1.msra.mxu0 0.0
    %400 = vmatprep.subr.mxu0 0.0
    %401 = vmatpush1.msra.mxu0 0.0
    %402 = vmatprep.subr.mxu0 0.0
    %403 = vmatpush1.msra.mxu0 0.0
    %404 = vmatprep.subr.mxu0 0.0
    %405 = vmatpush1.msra.mxu0 0.0
    %406 = vmatprep.subr.mxu0 0.0
    %407 = vmatpush1.msra.mxu0 0.0
    %408 = vmatprep.subr.mxu0 0.0
    %409 = vmatpush1.msra.mxu0 0.0
    %410 = vmatprep.subr.mxu0 0.0
    %411 = vmatpush1.msra.mxu0 0.0
    %412 = vmatprep.subr.mxu0 0.0
    %413 = vmatpush1.msra.mxu0 0.0
    %414 = vmatprep.subr.mxu0 0.0
    %415 = vmatpush1.msra.mxu0 0.0
    %416 = vmatprep.subr.mxu0 0.0
    %417 = vmatpush1.msra.mxu0 0.0
    %418 = vmatprep.subr.mxu0 0.0
    %419 = vmatpush1.msra.mxu0 0.0
    %420 = vmatprep.subr.mxu0 0.0
    %421 = vmatpush1.msra.mxu0 0.0
    %422 = vmatprep.subr.mxu0 0.0
    %423 = vmatpush1.msra.mxu0 0.0
    %424 = vmatprep.subr.mxu0 0.0
    %425 = vmatpush1.msra.mxu0 0.0
    %426 = vmatprep.subr.mxu0 0.0
    %427 = vmatpush1.msra.mxu0 0.0
    %428 = vmatprep.subr.mxu0 0.0
    %429 = vmatpush1.msra.mxu0 0.0
    %430 = vmatprep.subr.mxu0 0.0
    %431 = vmatpush1.msra.mxu0 0.0
    %432 = vmatprep.subr.mxu0 0.0
    %433 = vmatpush1.msra.mxu0 0.0
    %434 = vmatprep.subr.mxu0 0.0
    %435 = vmatpush1.msra.mxu0 0.0
    %436 = vmatprep.subr.mxu0 0.0
    %437 = vmatpush1.msra.mxu0 0.0
    %438 = vmatprep.subr.mxu0 0.0
    %439 = vmatpush1.msra.mxu0 0.0
    %440 = vmatprep.subr.mxu0 0.0
    %441 = vmatpush1.msra.mxu0 0.0
    %442 = vmatprep.subr.mxu0 0.0
    %443 = vmatpush1.msra.mxu0 0.0
    %444 = vmatprep.subr.mxu0 0.0
    %445 = vmatpush1.msra.mxu0 0.0
    %446 = vmatprep.subr.mxu0 0.0
    %447 = vmatpush1.msra.mxu0 0.0
    %448 = vmatprep.subr.mxu0 0.0
    %449 = vmatpush1.msra.mxu0 0.0
    %450 = vmatprep.subr.mxu0 0.0
    %451 = vmatpush1.msra.mxu0 0.0
    %452 = vmatprep.subr.mxu0 0.0
    %453 = vmatpush1.msra.mxu0 0.0
    %454 = vmatprep.subr.mxu0 0.0
    %455 = vmatpush1.msra.mxu0 0.0
    %456 = vmatprep.mubr.f32.mxu0 0.0
    %457 = vmatmul.mubr.f32.gmra.mrb[0].mxu0 %v229
    %v458 = vpop.f32.mrb[0].mxu0
    %v459 = vadd.f32 %v389, %v458
    %v460 = vpop.f32.mrb[0].mxu0
    %461 = vdwg.mxu0
    %s462 = scalar_lea.vmem [#allocation7], 1
    %v463 = vld [vmem:[%s462] sm:$0x1]
    %v465 = vlaneseq
    %v466 = vshrl.u32 %v465, 7
    %v467 = vsub.s32 0, %v466
    %v468 = vrot.slane %v463, %v467
    %v470 = vadd.f32 %v459, %v468
    %v471 = vsub.f32 0.0, %v470
    %v472 = vmul.f32 %v471, 1.442695
    %v473 = vpow.pop %v472
    %v474 = vadd.f32 %v473, 1.0
    %v475 = vrcp.pop %v474
    %s476 = scalar_lea.vmem %s2, 32
    %v477 = vld [vmem:[%s476] sm:$0xff]
    %v478 = vld [vmem:[%s476 + $0x8] sm:$0xff]
    %s479 = scalar_lea.vmem [#allocation7], 2
    %v480 = vld [vmem:[%s479] sm:$0x1]
    %v482 = vlaneseq
    %v483 = vshrl.u32 %v482, 7
    %v484 = vsub.s32 0, %v483
    %v485 = vrot.slane %v480, %v484
    %487 = vmatprep.subr.mxu0 0.0
    %488 = vmatpush1.msra.mxu0 %v477
    %489 = vmatprep.subr.mxu0 0.0
    %490 = vmatpush1.msra.mxu0 %v478
    %491 = vmatprep.subr.mxu0 0.0
    %492 = vmatpush1.msra.mxu0 0.0
    %493 = vmatprep.subr.mxu0 0.0
    %494 = vmatpush1.msra.mxu0 0.0
    %495 = vmatprep.subr.mxu0 0.0
    %496 = vmatpush1.msra.mxu0 0.0
    %497 = vmatprep.subr.mxu0 0.0
    %498 = vmatpush1.msra.mxu0 0.0
    %499 = vmatprep.subr.mxu0 0.0
    %500 = vmatpush1.msra.mxu0 0.0
    %501 = vmatprep.subr.mxu0 0.0
    %502 = vmatpush1.msra.mxu0 0.0
    %503 = vmatprep.subr.mxu0 0.0
    %504 = vmatpush1.msra.mxu0 0.0
    %505 = vmatprep.subr.mxu0 0.0
    %506 = vmatpush1.msra.mxu0 0.0
    %507 = vmatprep.subr.mxu0 0.0
    %508 = vmatpush1.msra.mxu0 0.0
    %509 = vmatprep.subr.mxu0 0.0
    %510 = vmatpush1.msra.mxu0 0.0
    %511 = vmatprep.subr.mxu0 0.0
    %512 = vmatpush1.msra.mxu0 0.0
    %513 = vmatprep.subr.mxu0 0.0
    %514 = vmatpush1.msra.mxu0 0.0
    %515 = vmatprep.subr.mxu0 0.0
    %516 = vmatpush1.msra.mxu0 0.0
    %517 = vmatprep.subr.mxu0 0.0
    %518 = vmatpush1.msra.mxu0 0.0
    %519 = vmatprep.subr.mxu0 0.0
    %520 = vmatpush1.msra.mxu0 0.0
    %521 = vmatprep.subr.mxu0 0.0
    %522 = vmatpush1.msra.mxu0 0.0
    %523 = vmatprep.subr.mxu0 0.0
    %524 = vmatpush1.msra.mxu0 0.0
    %525 = vmatprep.subr.mxu0 0.0
    %526 = vmatpush1.msra.mxu0 0.0
    %527 = vmatprep.subr.mxu0 0.0
    %528 = vmatpush1.msra.mxu0 0.0
    %529 = vmatprep.subr.mxu0 0.0
    %530 = vmatpush1.msra.mxu0 0.0
    %531 = vmatprep.subr.mxu0 0.0
    %532 = vmatpush1.msra.mxu0 0.0
    %533 = vmatprep.subr.mxu0 0.0
    %534 = vmatpush1.msra.mxu0 0.0
    %535 = vmatprep.subr.mxu0 0.0
    %536 = vmatpush1.msra.mxu0 0.0
    %537 = vmatprep.subr.mxu0 0.0
    %538 = vmatpush1.msra.mxu0 0.0
    %539 = vmatprep.subr.mxu0 0.0
    %540 = vmatpush1.msra.mxu0 0.0
    %541 = vmatprep.subr.mxu0 0.0
    %542 = vmatpush1.msra.mxu0 0.0
    %543 = vmatprep.subr.mxu0 0.0
    %544 = vmatpush1.msra.mxu0 0.0
    %545 = vmatprep.subr.mxu0 0.0
    %546 = vmatpush1.msra.mxu0 0.0
    %547 = vmatprep.subr.mxu0 0.0
    %548 = vmatpush1.msra.mxu0 0.0
    %549 = vmatprep.subr.mxu0 0.0
    %550 = vmatpush1.msra.mxu0 0.0
    %551 = vmatprep.mubr.f32.mxu0 0.0
    %552 = vmatmul.mubr.f32.gmra.mrb[0].mxu0 %v229
    %v553 = vpop.f32.mrb[0].mxu0
    %v554 = vadd.f32 %v485, %v553
    %v555 = vpop.f32.mrb[0].mxu0
    %556 = vdwg.mxu0
    %s557 = scalar_lea.vmem [#allocation5], 64
    %v558 = vld [vmem:[%s557] sm:$0xff]
    %v559 = vld [vmem:[%s557 + $0x8] sm:$0xff]
    %v560 = vld [vmem:[%s557 + $0x10] sm:$0xff]
    %v561 = vld [vmem:[%s557 + $0x18] sm:$0xff]
    %s562 = scalar_lea.vmem [#allocation7], 3
    %v563 = vld [vmem:[%s562] sm:$0x1]
    %v565 = vlaneseq
    %v566 = vshrl.u32 %v565, 7
    %v567 = vsub.s32 0, %v566
    %v568 = vrot.slane %v563, %v567
    %570 = vmatprep.subr.mxu0 0.0
    %571 = vmatpush1.msra.mxu0 %v558
    %572 = vmatprep.subr.mxu0 0.0
    %573 = vmatpush1.msra.mxu0 %v559
    %574 = vmatprep.subr.mxu0 0.0
    %575 = vmatpush1.msra.mxu0 %v560
    %576 = vmatprep.subr.mxu0 0.0
    %577 = vmatpush1.msra.mxu0 %v561
    %578 = vmatprep.subr.mxu0 0.0
    %579 = vmatpush1.msra.mxu0 0.0
    %580 = vmatprep.subr.mxu0 0.0
    %581 = vmatpush1.msra.mxu0 0.0
    %582 = vmatprep.subr.mxu0 0.0
    %583 = vmatpush1.msra.mxu0 0.0
    %584 = vmatprep.subr.mxu0 0.0
    %585 = vmatpush1.msra.mxu0 0.0
    %586 = vmatprep.subr.mxu0 0.0
    %587 = vmatpush1.msra.mxu0 0.0
    %588 = vmatprep.subr.mxu0 0.0
    %589 = vmatpush1.msra.mxu0 0.0
    %590 = vmatprep.subr.mxu0 0.0
    %591 = vmatpush1.msra.mxu0 0.0
    %592 = vmatprep.subr.mxu0 0.0
    %593 = vmatpush1.msra.mxu0 0.0
    %594 = vmatprep.subr.mxu0 0.0
    %595 = vmatpush1.msra.mxu0 0.0
    %596 = vmatprep.subr.mxu0 0.0
    %597 = vmatpush1.msra.mxu0 0.0
    %598 = vmatprep.subr.mxu0 0.0
    %599 = vmatpush1.msra.mxu0 0.0
    %600 = vmatprep.subr.mxu0 0.0
    %601 = vmatpush1.msra.mxu0 0.0
    %602 = vmatprep.subr.mxu0 0.0
    %603 = vmatpush1.msra.mxu0 0.0
    %604 = vmatprep.subr.mxu0 0.0
    %605 = vmatpush1.msra.mxu0 0.0
    %606 = vmatprep.subr.mxu0 0.0
    %607 = vmatpush1.msra.mxu0 0.0
    %608 = vmatprep.subr.mxu0 0.0
    %609 = vmatpush1.msra.mxu0 0.0
    %610 = vmatprep.subr.mxu0 0.0
    %611 = vmatpush1.msra.mxu0 0.0
    %612 = vmatprep.subr.mxu0 0.0
    %613 = vmatpush1.msra.mxu0 0.0
    %614 = vmatprep.subr.mxu0 0.0
    %615 = vmatpush1.msra.mxu0 0.0
    %616 = vmatprep.subr.mxu0 0.0
    %617 = vmatpush1.msra.mxu0 0.0
    %618 = vmatprep.subr.mxu0 0.0
    %619 = vmatpush1.msra.mxu0 0.0
    %620 = vmatprep.subr.mxu0 0.0
    %621 = vmatpush1.msra.mxu0 0.0
    %622 = vmatprep.subr.mxu0 0.0
    %623 = vmatpush1.msra.mxu0 0.0
    %624 = vmatprep.subr.mxu0 0.0
    %625 = vmatpush1.msra.mxu0 0.0
    %626 = vmatprep.subr.mxu0 0.0
    %627 = vmatpush1.msra.mxu0 0.0
    %628 = vmatprep.subr.mxu0 0.0
    %629 = vmatpush1.msra.mxu0 0.0
    %630 = vmatprep.subr.mxu0 0.0
    %631 = vmatpush1.msra.mxu0 0.0
    %632 = vmatprep.subr.mxu0 0.0
    %633 = vmatpush1.msra.mxu0 0.0
    %634 = vmatprep.mubr.f32.mxu0 0.0
    %635 = vmatmul.mubr.f32.gmra.mrb[0].mxu0 %v155
    %v636 = vpop.f32.mrb[0].mxu0
    %v637 = vadd.f32 %v568, %v636
    %v638 = vpop.f32.mrb[0].mxu0
    %639 = vdwg.mxu0
    %v640 = vmul.f32 %v313, %v637
    %v641 = vadd.f32 %v554, %v640
    %v642 = vtanh.pop %v641
    %v643 = vsub.f32 1.0, %v475
    %v644 = vmul.f32 %v643, %v642
    %v645 = vmul.f32 %v475, %v144
    %v646 = vadd.f32 %v644, %v645
    %v647 = vld [vmem:[#allocation8] sm:$0xff]
    %v648 = vld [vmem:[#allocation8 + $0x8] sm:$0xff]
    %v649 = vld [vmem:[#allocation8 + $0x10] sm:$0xff]
    %v650 = vld [vmem:[#allocation8 + $0x18] sm:$0xff]
    %v651 = vld [vmem:[#allocation10] sm:$0xff]
    %v652 = vld [vmem:[#allocation10 + $0x8] sm:$0xff]
    %v653 = vld [vmem:[#allocation10 + $0x10] sm:$0xff]
    %v654 = vld [vmem:[#allocation10 + $0x18] sm:$0xff]
    %v656 = vsel %vm153, %v146, 0
    %658 = vmatprep.subr.mxu0 0.0
    %659 = vmatpush1.msra.mxu0 %v651
    %660 = vmatprep.subr.mxu0 0.0
    %661 = vmatpush1.msra.mxu0 %v652
    %662 = vmatprep.subr.mxu0 0.0
    %663 = vmatpush1.msra.mxu0 %v653
    %664 = vmatprep.subr.mxu0 0.0
    %665 = vmatpush1.msra.mxu0 %v654
    %666 = vmatprep.subr.mxu0 0.0
    %667 = vmatpush1.msra.mxu0 0.0
    %668 = vmatprep.subr.mxu0 0.0
    %669 = vmatpush1.msra.mxu0 0.0
    %670 = vmatprep.subr.mxu0 0.0
    %671 = vmatpush1.msra.mxu0 0.0
    %672 = vmatprep.subr.mxu0 0.0
    %673 = vmatpush1.msra.mxu0 0.0
    %674 = vmatprep.subr.mxu0 0.0
    %675 = vmatpush1.msra.mxu0 0.0
    %676 = vmatprep.subr.mxu0 0.0
    %677 = vmatpush1.msra.mxu0 0.0
    %678 = vmatprep.subr.mxu0 0.0
    %679 = vmatpush1.msra.mxu0 0.0
    %680 = vmatprep.subr.mxu0 0.0
    %681 = vmatpush1.msra.mxu0 0.0
    %682 = vmatprep.subr.mxu0 0.0
    %683 = vmatpush1.msra.mxu0 0.0
    %684 = vmatprep.subr.mxu0 0.0
    %685 = vmatpush1.msra.mxu0 0.0
    %686 = vmatprep.subr.mxu0 0.0
    %687 = vmatpush1.msra.mxu0 0.0
    %688 = vmatprep.subr.mxu0 0.0
    %689 = vmatpush1.msra.mxu0 0.0
    %690 = vmatprep.subr.mxu0 0.0
    %691 = vmatpush1.msra.mxu0 0.0
    %692 = vmatprep.subr.mxu0 0.0
    %693 = vmatpush1.msra.mxu0 0.0
    %694 = vmatprep.subr.mxu0 0.0
    %695 = vmatpush1.msra.mxu0 0.0
    %696 = vmatprep.subr.mxu0 0.0
    %697 = vmatpush1.msra.mxu0 0.0
    %698 = vmatprep.subr.mxu0 0.0
    %699 = vmatpush1.msra.mxu0 0.0
    %700 = vmatprep.subr.mxu0 0.0
    %701 = vmatpush1.msra.mxu0 0.0
    %702 = vmatprep.subr.mxu0 0.0
    %703 = vmatpush1.msra.mxu0 0.0
    %704 = vmatprep.subr.mxu0 0.0
    %705 = vmatpush1.msra.mxu0 0.0
    %706 = vmatprep.subr.mxu0 0.0
    %707 = vmatpush1.msra.mxu0 0.0
    %708 = vmatprep.subr.mxu0 0.0
    %709 = vmatpush1.msra.mxu0 0.0
    %710 = vmatprep.subr.mxu0 0.0
    %711 = vmatpush1.msra.mxu0 0.0
    %712 = vmatprep.subr.mxu0 0.0
    %713 = vmatpush1.msra.mxu0 0.0
    %714 = vmatprep.subr.mxu0 0.0
    %715 = vmatpush1.msra.mxu0 0.0
    %716 = vmatprep.subr.mxu0 0.0
    %717 = vmatpush1.msra.mxu0 0.0
    %718 = vmatprep.subr.mxu0 0.0
    %719 = vmatpush1.msra.mxu0 0.0
    %720 = vmatprep.subr.mxu0 0.0
    %721 = vmatpush1.msra.mxu0 0.0
    %722 = vmatprep.mubr.f32.mxu0 0.0
    %723 = vmatmul.mubr.f32.gmra.mrb[0].mxu0 %v656
    %v724 = vpop.f32.mrb[0].mxu0
    %v725 = vadd.f32 0.0, %v724
    %v726 = vpop.f32.mrb[0].mxu0
    %727 = vdwg.mxu0
    %v729 = vsel %vm153, %v646, 0
    %731 = vmatprep.subr.mxu0 0.0
    %732 = vmatpush1.msra.mxu0 %v647
    %733 = vmatprep.subr.mxu0 0.0
    %734 = vmatpush1.msra.mxu0 %v648
    %735 = vmatprep.subr.mxu0 0.0
    %736 = vmatpush1.msra.mxu0 %v649
    %737 = vmatprep.subr.mxu0 0.0
    %738 = vmatpush1.msra.mxu0 %v650
    %739 = vmatprep.subr.mxu0 0.0
    %740 = vmatpush1.msra.mxu0 0.0
    %741 = vmatprep.subr.mxu0 0.0
    %742 = vmatpush1.msra.mxu0 0.0
    %743 = vmatprep.subr.mxu0 0.0
    %744 = vmatpush1.msra.mxu0 0.0
    %745 = vmatprep.subr.mxu0 0.0
    %746 = vmatpush1.msra.mxu0 0.0
    %747 = vmatprep.subr.mxu0 0.0
    %748 = vmatpush1.msra.mxu0 0.0
    %749 = vmatprep.subr.mxu0 0.0
    %750 = vmatpush1.msra.mxu0 0.0
    %751 = vmatprep.subr.mxu0 0.0
    %752 = vmatpush1.msra.mxu0 0.0
    %753 = vmatprep.subr.mxu0 0.0
    %754 = vmatpush1.msra.mxu0 0.0
    %755 = vmatprep.subr.mxu0 0.0
    %756 = vmatpush1.msra.mxu0 0.0
    %757 = vmatprep.subr.mxu0 0.0
    %758 = vmatpush1.msra.mxu0 0.0
    %759 = vmatprep.subr.mxu0 0.0
    %760 = vmatpush1.msra.mxu0 0.0
    %761 = vmatprep.subr.mxu0 0.0
    %762 = vmatpush1.msra.mxu0 0.0
    %763 = vmatprep.subr.mxu0 0.0
    %764 = vmatpush1.msra.mxu0 0.0
    %765 = vmatprep.subr.mxu0 0.0
    %766 = vmatpush1.msra.mxu0 0.0
    %767 = vmatprep.subr.mxu0 0.0
    %768 = vmatpush1.msra.mxu0 0.0
    %769 = vmatprep.subr.mxu0 0.0
    %770 = vmatpush1.msra.mxu0 0.0
    %771 = vmatprep.subr.mxu0 0.0
    %772 = vmatpush1.msra.mxu0 0.0
    %773 = vmatprep.subr.mxu0 0.0
    %774 = vmatpush1.msra.mxu0 0.0
    %775 = vmatprep.subr.mxu0 0.0
    %776 = vmatpush1.msra.mxu0 0.0
    %777 = vmatprep.subr.mxu0 0.0
    %778 = vmatpush1.msra.mxu0 0.0
    %779 = vmatprep.subr.mxu0 0.0
    %780 = vmatpush1.msra.mxu0 0.0
    %781 = vmatprep.subr.mxu0 0.0
    %782 = vmatpush1.msra.mxu0 0.0
    %783 = vmatprep.subr.mxu0 0.0
    %784 = vmatpush1.msra.mxu0 0.0
    %785 = vmatprep.subr.mxu0 0.0
    %786 = vmatpush1.msra.mxu0 0.0
    %787 = vmatprep.subr.mxu0 0.0
    %788 = vmatpush1.msra.mxu0 0.0
    %789 = vmatprep.subr.mxu0 0.0
    %790 = vmatpush1.msra.mxu0 0.0
    %791 = vmatprep.subr.mxu0 0.0
    %792 = vmatpush1.msra.mxu0 0.0
    %793 = vmatprep.subr.mxu0 0.0
    %794 = vmatpush1.msra.mxu0 0.0
    %795 = vmatprep.mubr.f32.mxu0 0.0
    %796 = vmatmul.mubr.f32.gmra.mrb[0].mxu0 %v729
    %v797 = vpop.f32.mrb[0].mxu0
    %v798 = vadd.f32 %v725, %v797
    %v799 = vpop.f32.mrb[0].mxu0
    %800 = vdwg.mxu0
    %v801 = vld [vmem:[#allocation11] sm:$0x1]
    %v803 = vlaneseq
    %v804 = vshrl.u32 %v803, 7
    %v805 = vsub.s32 0, %v804
    %v806 = vrot.slane %v801, %v805
    %v808 = vadd.f32 %v798, %v806
    %v809 = vsub.f32 0.0, %v808
    %v810 = vmul.f32 %v809, 1.442695
    %v811 = vpow.pop %v810
    %v812 = vadd.f32 %v811, 1.0
    %v813 = vrcp.pop %v812
    %s814 = scalar_lea.vmem [#allocation8], 32
    %v815 = vld [vmem:[%s814] sm:$0xff]
    %v816 = vld [vmem:[%s814 + $0x8] sm:$0xff]
    %v817 = vld [vmem:[%s814 + $0x10] sm:$0xff]
    %v818 = vld [vmem:[%s814 + $0x18] sm:$0xff]
    %s819 = scalar_lea.vmem [#allocation10], 32
    %v820 = vld [vmem:[%s819] sm:$0xff]
    %v821 = vld [vmem:[%s819 + $0x8] sm:$0xff]
    %v822 = vld [vmem:[%s819 + $0x10] sm:$0xff]
    %v823 = vld [vmem:[%s819 + $0x18] sm:$0xff]
    %824 = vmatprep.subr.mxu0 0.0
    %825 = vmatpush1.msra.mxu0 %v820
    %826 = vmatprep.subr.mxu0 0.0
    %827 = vmatpush1.msra.mxu0 %v821
    %828 = vmatprep.subr.mxu0 0.0
    %829 = vmatpush1.msra.mxu0 %v822
    %830 = vmatprep.subr.mxu0 0.0
    %831 = vmatpush1.msra.mxu0 %v823
    %832 = vmatprep.subr.mxu0 0.0
    %833 = vmatpush1.msra.mxu0 0.0
    %834 = vmatprep.subr.mxu0 0.0
    %835 = vmatpush1.msra.mxu0 0.0
    %836 = vmatprep.subr.mxu0 0.0
    %837 = vmatpush1.msra.mxu0 0.0
    %838 = vmatprep.subr.mxu0 0.0
    %839 = vmatpush1.msra.mxu0 0.0
    %840 = vmatprep.subr.mxu0 0.0
    %841 = vmatpush1.msra.mxu0 0.0
    %842 = vmatprep.subr.mxu0 0.0
    %843 = vmatpush1.msra.mxu0 0.0
    %844 = vmatprep.subr.mxu0 0.0
    %845 = vmatpush1.msra.mxu0 0.0
    %846 = vmatprep.subr.mxu0 0.0
    %847 = vmatpush1.msra.mxu0 0.0
    %848 = vmatprep.subr.mxu0 0.0
    %849 = vmatpush1.msra.mxu0 0.0
    %850 = vmatprep.subr.mxu0 0.0
    %851 = vmatpush1.msra.mxu0 0.0
    %852 = vmatprep.subr.mxu0 0.0
    %853 = vmatpush1.msra.mxu0 0.0
    %854 = vmatprep.subr.mxu0 0.0
    %855 = vmatpush1.msra.mxu0 0.0
    %856 = vmatprep.subr.mxu0 0.0
    %857 = vmatpush1.msra.mxu0 0.0
    %858 = vmatprep.subr.mxu0 0.0
    %859 = vmatpush1.msra.mxu0 0.0
    %860 = vmatprep.subr.mxu0 0.0
    %861 = vmatpush1.msra.mxu0 0.0
    %862 = vmatprep.subr.mxu0 0.0
    %863 = vmatpush1.msra.mxu0 0.0
    %864 = vmatprep.subr.mxu0 0.0
    %865 = vmatpush1.msra.mxu0 0.0
    %866 = vmatprep.subr.mxu0 0.0
    %867 = vmatpush1.msra.mxu0 0.0
    %868 = vmatprep.subr.mxu0 0.0
    %869 = vmatpush1.msra.mxu0 0.0
    %870 = vmatprep.subr.mxu0 0.0
    %871 = vmatpush1.msra.mxu0 0.0
    %872 = vmatprep.subr.mxu0 0.0
    %873 = vmatpush1.msra.mxu0 0.0
    %874 = vmatprep.subr.mxu0 0.0
    %875 = vmatpush1.msra.mxu0 0.0
    %876 = vmatprep.subr.mxu0 0.0
    %877 = vmatpush1.msra.mxu0 0.0
    %878 = vmatprep.subr.mxu0 0.0
    %879 = vmatpush1.msra.mxu0 0.0
    %880 = vmatprep.subr.mxu0 0.0
    %881 = vmatpush1.msra.mxu0 0.0
    %882 = vmatprep.subr.mxu0 0.0
    %883 = vmatpush1.msra.mxu0 0.0
    %884 = vmatprep.subr.mxu0 0.0
    %885 = vmatpush1.msra.mxu0 0.0
    %886 = vmatprep.subr.mxu0 0.0
    %887 = vmatpush1.msra.mxu0 0.0
    %888 = vmatprep.mubr.f32.mxu0 0.0
    %889 = vmatmul.mubr.f32.gmra.mrb[0].mxu0 %v656
    %v890 = vpop.f32.mrb[0].mxu0
    %v891 = vadd.f32 0.0, %v890
    %v892 = vpop.f32.mrb[0].mxu0
    %893 = vdwg.mxu0
    %894 = vmatprep.subr.mxu0 0.0
    %895 = vmatpush1.msra.mxu0 %v815
    %896 = vmatprep.subr.mxu0 0.0
    %897 = vmatpush1.msra.mxu0 %v816
    %898 = vmatprep.subr.mxu0 0.0
    %899 = vmatpush1.msra.mxu0 %v817
    %900 = vmatprep.subr.mxu0 0.0
    %901 = vmatpush1.msra.mxu0 %v818
    %902 = vmatprep.subr.mxu0 0.0
    %903 = vmatpush1.msra.mxu0 0.0
    %904 = vmatprep.subr.mxu0 0.0
    %905 = vmatpush1.msra.mxu0 0.0
    %906 = vmatprep.subr.mxu0 0.0
    %907 = vmatpush1.msra.mxu0 0.0
    %908 = vmatprep.subr.mxu0 0.0
    %909 = vmatpush1.msra.mxu0 0.0
    %910 = vmatprep.subr.mxu0 0.0
    %911 = vmatpush1.msra.mxu0 0.0
    %912 = vmatprep.subr.mxu0 0.0
    %913 = vmatpush1.msra.mxu0 0.0
    %914 = vmatprep.subr.mxu0 0.0
    %915 = vmatpush1.msra.mxu0 0.0
    %916 = vmatprep.subr.mxu0 0.0
    %917 = vmatpush1.msra.mxu0 0.0
    %918 = vmatprep.subr.mxu0 0.0
    %919 = vmatpush1.msra.mxu0 0.0
    %920 = vmatprep.subr.mxu0 0.0
    %921 = vmatpush1.msra.mxu0 0.0
    %922 = vmatprep.subr.mxu0 0.0
    %923 = vmatpush1.msra.mxu0 0.0
    %924 = vmatprep.subr.mxu0 0.0
    %925 = vmatpush1.msra.mxu0 0.0
    %926 = vmatprep.subr.mxu0 0.0
    %927 = vmatpush1.msra.mxu0 0.0
    %928 = vmatprep.subr.mxu0 0.0
    %929 = vmatpush1.msra.mxu0 0.0
    %930 = vmatprep.subr.mxu0 0.0
    %931 = vmatpush1.msra.mxu0 0.0
    %932 = vmatprep.subr.mxu0 0.0
    %933 = vmatpush1.msra.mxu0 0.0
    %934 = vmatprep.subr.mxu0 0.0
    %935 = vmatpush1.msra.mxu0 0.0
    %936 = vmatprep.subr.mxu0 0.0
    %937 = vmatpush1.msra.mxu0 0.0
    %938 = vmatprep.subr.mxu0 0.0
    %939 = vmatpush1.msra.mxu0 0.0
    %940 = vmatprep.subr.mxu0 0.0
    %941 = vmatpush1.msra.mxu0 0.0
    %942 = vmatprep.subr.mxu0 0.0
    %943 = vmatpush1.msra.mxu0 0.0
    %944 = vmatprep.subr.mxu0 0.0
    %945 = vmatpush1.msra.mxu0 0.0
    %946 = vmatprep.subr.mxu0 0.0
    %947 = vmatpush1.msra.mxu0 0.0
    %948 = vmatprep.subr.mxu0 0.0
    %949 = vmatpush1.msra.mxu0 0.0
    %950 = vmatprep.subr.mxu0 0.0
    %951 = vmatpush1.msra.mxu0 0.0
    %952 = vmatprep.subr.mxu0 0.0
    %953 = vmatpush1.msra.mxu0 0.0
    %954 = vmatprep.subr.mxu0 0.0
    %955 = vmatpush1.msra.mxu0 0.0
    %956 = vmatprep.subr.mxu0 0.0
    %957 = vmatpush1.msra.mxu0 0.0
    %958 = vmatprep.mubr.f32.mxu0 0.0
    %959 = vmatmul.mubr.f32.gmra.mrb[0].mxu0 %v729
    %v960 = vpop.f32.mrb[0].mxu0
    %v961 = vadd.f32 %v891, %v960
    %v962 = vpop.f32.mrb[0].mxu0
    %963 = vdwg.mxu0
    %s964 = scalar_lea.vmem [#allocation11], 1
    %v965 = vld [vmem:[%s964] sm:$0x1]
    %v967 = vlaneseq
    %v968 = vshrl.u32 %v967, 7
    %v969 = vsub.s32 0, %v968
    %v970 = vrot.slane %v965, %v969
    %v972 = vadd.f32 %v961, %v970
    %v973 = vsub.f32 0.0, %v972
    %v974 = vmul.f32 %v973, 1.442695
    %v975 = vpow.pop %v974
    %v976 = vadd.f32 %v975, 1.0
    %v977 = vrcp.pop %v976
    %s978 = scalar_lea.vmem [#allocation8], 64
    %v979 = vld [vmem:[%s978] sm:$0xff]
    %v980 = vld [vmem:[%s978 + $0x8] sm:$0xff]
    %v981 = vld [vmem:[%s978 + $0x10] sm:$0xff]
    %v982 = vld [vmem:[%s978 + $0x18] sm:$0xff]
    %s983 = scalar_lea.vmem [#allocation11], 2
    %v984 = vld [vmem:[%s983] sm:$0x1]
    %v986 = vlaneseq
    %v987 = vshrl.u32 %v986, 7
    %v988 = vsub.s32 0, %v987
    %v989 = vrot.slane %v984, %v988
    %991 = vmatprep.subr.mxu0 0.0
    %992 = vmatpush1.msra.mxu0 %v979
    %993 = vmatprep.subr.mxu0 0.0
    %994 = vmatpush1.msra.mxu0 %v980
    %995 = vmatprep.subr.mxu0 0.0
    %996 = vmatpush1.msra.mxu0 %v981
    %997 = vmatprep.subr.mxu0 0.0
    %998 = vmatpush1.msra.mxu0 %v982
    %999 = vmatprep.subr.mxu0 0.0
    %1000 = vmatpush1.msra.mxu0 0.0
    %1001 = vmatprep.subr.mxu0 0.0
    %1002 = vmatpush1.msra.mxu0 0.0
    %1003 = vmatprep.subr.mxu0 0.0
    %1004 = vmatpush1.msra.mxu0 0.0
    %1005 = vmatprep.subr.mxu0 0.0
    %1006 = vmatpush1.msra.mxu0 0.0
    %1007 = vmatprep.subr.mxu0 0.0
    %1008 = vmatpush1.msra.mxu0 0.0
    %1009 = vmatprep.subr.mxu0 0.0
    %1010 = vmatpush1.msra.mxu0 0.0
    %1011 = vmatprep.subr.mxu0 0.0
    %1012 = vmatpush1.msra.mxu0 0.0
    %1013 = vmatprep.subr.mxu0 0.0
    %1014 = vmatpush1.msra.mxu0 0.0
    %1015 = vmatprep.subr.mxu0 0.0
    %1016 = vmatpush1.msra.mxu0 0.0
    %1017 = vmatprep.subr.mxu0 0.0
    %1018 = vmatpush1.msra.mxu0 0.0
    %1019 = vmatprep.subr.mxu0 0.0
    %1020 = vmatpush1.msra.mxu0 0.0
    %1021 = vmatprep.subr.mxu0 0.0
    %1022 = vmatpush1.msra.mxu0 0.0
    %1023 = vmatprep.subr.mxu0 0.0
    %1024 = vmatpush1.msra.mxu0 0.0
    %1025 = vmatprep.subr.mxu0 0.0
    %1026 = vmatpush1.msra.mxu0 0.0
    %1027 = vmatprep.subr.mxu0 0.0
    %1028 = vmatpush1.msra.mxu0 0.0
    %1029 = vmatprep.subr.mxu0 0.0
    %1030 = vmatpush1.msra.mxu0 0.0
    %1031 = vmatprep.subr.mxu0 0.0
    %1032 = vmatpush1.msra.mxu0 0.0
    %1033 = vmatprep.subr.mxu0 0.0
    %1034 = vmatpush1.msra.mxu0 0.0
    %1035 = vmatprep.subr.mxu0 0.0
    %1036 = vmatpush1.msra.mxu0 0.0
    %1037 = vmatprep.subr.mxu0 0.0
    %1038 = vmatpush1.msra.mxu0 0.0
    %1039 = vmatprep.subr.mxu0 0.0
    %1040 = vmatpush1.msra.mxu0 0.0
    %1041 = vmatprep.subr.mxu0 0.0
    %1042 = vmatpush1.msra.mxu0 0.0
    %1043 = vmatprep.subr.mxu0 0.0
    %1044 = vmatpush1.msra.mxu0 0.0
    %1045 = vmatprep.subr.mxu0 0.0
    %1046 = vmatpush1.msra.mxu0 0.0
    %1047 = vmatprep.subr.mxu0 0.0
    %1048 = vmatpush1.msra.mxu0 0.0
    %1049 = vmatprep.subr.mxu0 0.0
    %1050 = vmatpush1.msra.mxu0 0.0
    %1051 = vmatprep.subr.mxu0 0.0
    %1052 = vmatpush1.msra.mxu0 0.0
    %1053 = vmatprep.subr.mxu0 0.0
    %1054 = vmatpush1.msra.mxu0 0.0
    %1055 = vmatprep.mubr.f32.mxu0 0.0
    %1056 = vmatmul.mubr.f32.gmra.mrb[0].mxu0 %v729
    %v1057 = vpop.f32.mrb[0].mxu0
    %v1058 = vadd.f32 %v989, %v1057
    %v1059 = vpop.f32.mrb[0].mxu0
    %1060 = vdwg.mxu0
    %s1061 = scalar_lea.vmem [#allocation10], 64
    %v1062 = vld [vmem:[%s1061] sm:$0xff]
    %v1063 = vld [vmem:[%s1061 + $0x8] sm:$0xff]
    %v1064 = vld [vmem:[%s1061 + $0x10] sm:$0xff]
    %v1065 = vld [vmem:[%s1061 + $0x18] sm:$0xff]
    %s1066 = scalar_lea.vmem [#allocation11], 3
    %v1067 = vld [vmem:[%s1066] sm:$0x1]
    %v1069 = vlaneseq
    %v1070 = vshrl.u32 %v1069, 7
    %v1071 = vsub.s32 0, %v1070
    %v1072 = vrot.slane %v1067, %v1071
    %1074 = vmatprep.subr.mxu0 0.0
    %1075 = vmatpush1.msra.mxu0 %v1062
    %1076 = vmatprep.subr.mxu0 0.0
    %1077 = vmatpush1.msra.mxu0 %v1063
    %1078 = vmatprep.subr.mxu0 0.0
    %1079 = vmatpush1.msra.mxu0 %v1064
    %1080 = vmatprep.subr.mxu0 0.0
    %1081 = vmatpush1.msra.mxu0 %v1065
    %1082 = vmatprep.subr.mxu0 0.0
    %1083 = vmatpush1.msra.mxu0 0.0
    %1084 = vmatprep.subr.mxu0 0.0
    %1085 = vmatpush1.msra.mxu0 0.0
    %1086 = vmatprep.subr.mxu0 0.0
    %1087 = vmatpush1.msra.mxu0 0.0
    %1088 = vmatprep.subr.mxu0 0.0
    %1089 = vmatpush1.msra.mxu0 0.0
    %1090 = vmatprep.subr.mxu0 0.0
    %1091 = vmatpush1.msra.mxu0 0.0
    %1092 = vmatprep.subr.mxu0 0.0
    %1093 = vmatpush1.msra.mxu0 0.0
    %1094 = vmatprep.subr.mxu0 0.0
    %1095 = vmatpush1.msra.mxu0 0.0
    %1096 = vmatprep.subr.mxu0 0.0
    %1097 = vmatpush1.msra.mxu0 0.0
    %1098 = vmatprep.subr.mxu0 0.0
    %1099 = vmatpush1.msra.mxu0 0.0
    %1100 = vmatprep.subr.mxu0 0.0
    %1101 = vmatpush1.msra.mxu0 0.0
    %1102 = vmatprep.subr.mxu0 0.0
    %1103 = vmatpush1.msra.mxu0 0.0
    %1104 = vmatprep.subr.mxu0 0.0
    %1105 = vmatpush1.msra.mxu0 0.0
    %1106 = vmatprep.subr.mxu0 0.0
    %1107 = vmatpush1.msra.mxu0 0.0
    %1108 = vmatprep.subr.mxu0 0.0
    %1109 = vmatpush1.msra.mxu0 0.0
    %1110 = vmatprep.subr.mxu0 0.0
    %1111 = vmatpush1.msra.mxu0 0.0
    %1112 = vmatprep.subr.mxu0 0.0
    %1113 = vmatpush1.msra.mxu0 0.0
    %1114 = vmatprep.subr.mxu0 0.0
    %1115 = vmatpush1.msra.mxu0 0.0
    %1116 = vmatprep.subr.mxu0 0.0
    %1117 = vmatpush1.msra.mxu0 0.0
    %1118 = vmatprep.subr.mxu0 0.0
    %1119 = vmatpush1.msra.mxu0 0.0
    %1120 = vmatprep.subr.mxu0 0.0
    %1121 = vmatpush1.msra.mxu0 0.0
    %1122 = vmatprep.subr.mxu0 0.0
    %1123 = vmatpush1.msra.mxu0 0.0
    %1124 = vmatprep.subr.mxu0 0.0
    %1125 = vmatpush1.msra.mxu0 0.0
    %1126 = vmatprep.subr.mxu0 0.0
    %1127 = vmatpush1.msra.mxu0 0.0
    %1128 = vmatprep.subr.mxu0 0.0
    %1129 = vmatpush1.msra.mxu0 0.0
    %1130 = vmatprep.subr.mxu0 0.0
    %1131 = vmatpush1.msra.mxu0 0.0
    %1132 = vmatprep.subr.mxu0 0.0
    %1133 = vmatpush1.msra.mxu0 0.0
    %1134 = vmatprep.subr.mxu0 0.0
    %1135 = vmatpush1.msra.mxu0 0.0
    %1136 = vmatprep.subr.mxu0 0.0
    %1137 = vmatpush1.msra.mxu0 0.0
    %1138 = vmatprep.mubr.f32.mxu0 0.0
    %1139 = vmatmul.mubr.f32.gmra.mrb[0].mxu0 %v656
    %v1140 = vpop.f32.mrb[0].mxu0
    %v1141 = vadd.f32 %v1072, %v1140
    %v1142 = vpop.f32.mrb[0].mxu0
    %1143 = vdwg.mxu0
    %v1144 = vmul.f32 %v813, %v1141
    %v1145 = vadd.f32 %v1058, %v1144
    %v1146 = vtanh.pop %v1145
    %v1147 = vsub.f32 1.0, %v977
    %v1148 = vmul.f32 %v1147, %v1146
    %v1149 = vmul.f32 %v977, %v146
    %v1150 = vadd.f32 %v1148, %v1149
    %v1151 = vld [vmem:[#allocation13] sm:$0xff]
    %v1152 = vld [vmem:[#allocation13 + $0x8] sm:$0xff]
    %v1153 = vld [vmem:[#allocation13 + $0x10] sm:$0xff]
    %v1154 = vld [vmem:[#allocation13 + $0x18] sm:$0xff]
    %v1155 = vld [vmem:[%s9] sm:$0x1]
    %v1157 = vlaneseq
    %v1158 = vshrl.u32 %v1157, 7
    %v1159 = vsub.s32 0, %v1158
    %v1160 = vrot.slane %v1155, %v1159
    %v1163 = vsel %vm153, %v1150, 0
    %1165 = vmatprep.subr.mxu0 0.0
    %1166 = vmatpush1.msra.mxu0 %v1151
    %1167 = vmatprep.subr.mxu0 0.0
    %1168 = vmatpush1.msra.mxu0 %v1152
    %1169 = vmatprep.subr.mxu0 0.0
    %1170 = vmatpush1.msra.mxu0 %v1153
    %1171 = vmatprep.subr.mxu0 0.0
    %1172 = vmatpush1.msra.mxu0 %v1154
    %1173 = vmatprep.subr.mxu0 0.0
    %1174 = vmatpush1.msra.mxu0 0.0
    %1175 = vmatprep.subr.mxu0 0.0
    %1176 = vmatpush1.msra.mxu0 0.0
    %1177 = vmatprep.subr.mxu0 0.0
    %1178 = vmatpush1.msra.mxu0 0.0
    %1179 = vmatprep.subr.mxu0 0.0
    %1180 = vmatpush1.msra.mxu0 0.0
    %1181 = vmatprep.subr.mxu0 0.0
    %1182 = vmatpush1.msra.mxu0 0.0
    %1183 = vmatprep.subr.mxu0 0.0
    %1184 = vmatpush1.msra.mxu0 0.0
    %1185 = vmatprep.subr.mxu0 0.0
    %1186 = vmatpush1.msra.mxu0 0.0
    %1187 = vmatprep.subr.mxu0 0.0
    %1188 = vmatpush1.msra.mxu0 0.0
    %1189 = vmatprep.subr.mxu0 0.0
    %1190 = vmatpush1.msra.mxu0 0.0
    %1191 = vmatprep.subr.mxu0 0.0
    %1192 = vmatpush1.msra.mxu0 0.0
    %1193 = vmatprep.subr.mxu0 0.0
    %1194 = vmatpush1.msra.mxu0 0.0
    %1195 = vmatprep.subr.mxu0 0.0
    %1196 = vmatpush1.msra.mxu0 0.0
    %1197 = vmatprep.subr.mxu0 0.0
    %1198 = vmatpush1.msra.mxu0 0.0
    %1199 = vmatprep.subr.mxu0 0.0
    %1200 = vmatpush1.msra.mxu0 0.0
    %1201 = vmatprep.subr.mxu0 0.0
    %1202 = vmatpush1.msra.mxu0 0.0
    %1203 = vmatprep.subr.mxu0 0.0
    %1204 = vmatpush1.msra.mxu0 0.0
    %1205 = vmatprep.subr.mxu0 0.0
    %1206 = vmatpush1.msra.mxu0 0.0
    %1207 = vmatprep.subr.mxu0 0.0
    %1208 = vmatpush1.msra.mxu0 0.0
    %1209 = vmatprep.subr.mxu0 0.0
    %1210 = vmatpush1.msra.mxu0 0.0
    %1211 = vmatprep.subr.mxu0 0.0
    %1212 = vmatpush1.msra.mxu0 0.0
    %1213 = vmatprep.subr.mxu0 0.0
    %1214 = vmatpush1.msra.mxu0 0.0
    %1215 = vmatprep.subr.mxu0 0.0
    %1216 = vmatpush1.msra.mxu0 0.0
    %1217 = vmatprep.subr.mxu0 0.0
    %1218 = vmatpush1.msra.mxu0 0.0
    %1219 = vmatprep.subr.mxu0 0.0
    %1220 = vmatpush1.msra.mxu0 0.0
    %1221 = vmatprep.subr.mxu0 0.0
    %1222 = vmatpush1.msra.mxu0 0.0
    %1223 = vmatprep.subr.mxu0 0.0
    %1224 = vmatpush1.msra.mxu0 0.0
    %1225 = vmatprep.subr.mxu0 0.0
    %1226 = vmatpush1.msra.mxu0 0.0
    %1227 = vmatprep.subr.mxu0 0.0
    %1228 = vmatpush1.msra.mxu0 0.0
    %1229 = vmatprep.mubr.f32.mxu0 0.0
    %1230 = vmatmul.mubr.f32.gmra.mrb[0].mxu0 %v1163
    %v1231 = vpop.f32.mrb[0].mxu0
    %v1232 = vadd.f32 %v1160, %v1231
    %v1233 = vpop.f32.mrb[0].mxu0
    %1234 = vdwg.mxu0
    %1235 = vmax.xlane.f32.xlu0 %v1232
    %v1236 = vpop.xlane.xlu0 %1235
    %v1237 = vsub.f32 %v1232, %v1236
    %v1238 = vmul.f32 %v1237, 1.442695
    %v1239 = vpow.pop %v1238
    %1240 = vadd.xlane.f32.xlu0 %v1239
    %v1241 = vpop.xlane.xlu0 %1240
    %v1242 = vrcp.pop %v1241
    %v1243 = vmul.f32 %v1239, %v1242
    %1244 = vst [vmem:[#allocation14] sm:$0xff] %v1243
    %1245 = vst.msk [vmem:[#allocation15] sm:$0xff] %vm153, %v646
    %1246 = vst.msk [vmem:[%s145] sm:$0xff] %vm153, %v1150
    // Predicated region
    $region74: #{tpu_custom_call.1} parent=1 // pred_check
      _
    $region75: #{tpu_custom_call.1} parent=1 // pred_check_branch
      %1248 = sbr.rel (0) target = $region77
    $region76: #{tpu_custom_call.1} parent=1 // pred_region
      %s1250 = ssub.s32 128, 128
      %1251 = vsyncadd [#allocation4], %s1250
      %s1253 = sshll.u32 [#allocation14], 4
      %s1254 = int_to_ptr.vmem [resolvable:$true] %s1253
      %1256 = dma.vmem_to_hbm [thread:$0]  %s1254, 128, %s10, [#allocation4]
    $region77: #{tpu_custom_call.1} parent=1 // pred_fallthru
      _
    // Predicated region
    $region78: #{tpu_custom_call.1} parent=1 // pred_check
      _
    $region79: #{tpu_custom_call.1} parent=1 // pred_check_branch
      %1258 = sbr.rel (0) target = $region81
    $region80: #{tpu_custom_call.1} parent=1 // pred_region
      %s1260 = ssub.s32 256, 256
      %1261 = vsyncadd [#allocation16], %s1260
      %s1262 = sshll.u32 [#allocation15], 4
      %s1263 = int_to_ptr.vmem [resolvable:$true] %s1262
      %1268 = dma.vmem_to_hbm [thread:$0]  %s1263, 256, %s11, [#allocation16], 128, 128, 8
    $region81: #{tpu_custom_call.1} parent=1 // pred_fallthru
      _
    // Predicated region
    $region82: #{tpu_custom_call.1} parent=1 // pred_check
      _
    $region83: #{tpu_custom_call.1} parent=1 // pred_check_branch
      %1270 = sbr.rel (0) target = $region85
    $region84: #{tpu_custom_call.1} parent=1 // pred_region
      %1271 = dma.done [#allocation4], 128
    $region85: #{tpu_custom_call.1} parent=1 // pred_fallthru
      _
    // Predicated region
    $region86: #{tpu_custom_call.1} parent=1 // pred_check
      _
    $region87: #{tpu_custom_call.1} parent=1 // pred_check_branch
      %1273 = sbr.rel (0) target = $region89
    $region88: #{tpu_custom_call.1} parent=1 // pred_region
      %1274 = dma.done [#allocation16], 256
    $region89: #{tpu_custom_call.1} parent=1 // pred_fallthru
      _
    %1275 = vsyncpa [#allocation3], 1
    %1276 = vsyncpa [#allocation6], 1
    %1277 = vsyncpa [#allocation9], 1
    %1278 = vsyncpa [#allocation12], 1
    %1279 = vsyncpa [#allocation4], 1
    %1280 = vsyncpa [#allocation16], 1

</llo_original>
